<compile_context>
chip_gen: v5e
topology: v5e:2x2
jax: 0.10.0
libtpu: 0.0.40
codegen_flags: <defaults>
</compile_context>

<pallas_src>
import functools

import jax
import jax.numpy as jnp
from jax import lax
from jax.experimental import pallas as pl
from jax.experimental.pallas import tpu as pltpu


def _ru(x, m):
    return (x + m - 1) // m * m


_TM_CAP = 512          # single-M-block (fused BN) path allowed up to this M
_TM_FALLBACK = 256     # M tile for the multi-M-block fallback path


# ---------------------------------------------------------------------------
# Generation-aware hardware info (VMEM budget, #TensorCores per chip)
# ---------------------------------------------------------------------------
@functools.lru_cache(maxsize=None)
def _hw_info():
    cap, ntc = 64 << 20, 1           # conservative defaults (no N-split)
    try:
        info = pltpu.get_tpu_info()
        cap = int(getattr(info, "vmem_capacity_bytes", cap))
        if cap < (32 << 20):
            cap = 64 << 20
        ntc = int(getattr(info, "num_cores", 0) or getattr(info, "core_count", 0) or 0)
        if ntc <= 0:
            # v7x exposes 64 MiB VMEM per TensorCore and has 2 TCs/chip;
            # v5e/v6e report 128 MiB and have a single TC.
            ntc = 2 if cap <= (64 << 20) else 1
    except Exception:
        cap, ntc = 64 << 20, 1
    return cap, ntc


def _vmem_budget_and_limit():
    cap, _ = _hw_info()
    budget = min(cap // 2, 48 << 20)                      # tile working set
    limit = int(min(cap - (8 << 20), budget + (16 << 20)))  # scoped VMEM limit
    return budget, limit


def _pick_tiles(M, K, N, has_res):
    """Tile sizes for the (M,K)@(K,N) conv matmul.

    Prefer the fewest grid steps: tn up to the full padded N and tk up to the
    full padded K, limited only by the generation-aware VMEM budget (the
    workload here is weight-stream / per-step-overhead bound, not MXU bound).
    """
    budget, _ = _vmem_budget_and_limit()
    _, ntc = _hw_info()
    Mr = _ru(M, 16)
    fused = Mr <= _TM_CAP
    tm = Mr if fused else _TM_FALLBACK
    Kp, Np = _ru(K, 128), _ru(N, 128)

    def nbytes(tk, tn):
        b = 2 * (tm * tk * 2)            # A block (bf16, double-buffered)
        b += 2 * (tk * tn * 2)           # weight block
        b += 2 * (tm * tn * 2)           # output block
        b += tm * tn * 4                 # f32 accumulator scratch
        if has_res:
            b += 2 * (tm * tn * 2)       # residual block
        b += 4 * (8 * tn * 4)            # gamma/beta or stats blocks (small)
        return b

    tn_cands = [c for c in range(Np, 127, -128) if Np % c == 0]
    tk_cands = [c for c in range(Kp, 127, -128) if Kp % c == 0]
    best = None
    for tn in tn_cands:
        for tk in tk_cands:
            if nbytes(tk, tn) <= budget:
                steps = (Np // tn) * (Kp // tk)
                key = (steps, Np // tn)          # fewest steps, widest N tile
                if best is None or key < best[0]:
                    best = (key, tk, tn)
                break                            # largest fitting tk for this tn
    if best is None:
        tk, tn = 128, 128
    else:
        _, tk, tn = best

    # Megacore: only on 2-TC chips (v7x), and only in the single-M-block,
    # single-N-block case, split N so both TensorCores get work.  On v5e/v6e
    # (single TC) splitting just doubles grid steps for nothing.
    if ntc >= 2 and fused and Np // tn == 1 and tn % 256 == 0:
        tn //= 2
    return tm, tk, tn, fused


# ---------------------------------------------------------------------------
# Shared kernel helpers
# ---------------------------------------------------------------------------
def _apply_act(z, act, slope):
    if act == "relu":
        return jnp.maximum(z, 0.0)
    if act == "prelu":
        return jnp.where(z > 0.0, z, slope * z)
    return z


def _bn_affine(acc, g, b, m_real, eps):
    # Training-mode BatchNorm over (N,H,W) with biased variance; acc rows
    # beyond the real M are exact zeros (zero-padded A, no conv bias).
    inv_m = 1.0 / m_real
    mean = jnp.sum(acc, axis=0, keepdims=True) * inv_m
    var = jnp.maximum(jnp.sum(acc * acc, axis=0, keepdims=True) * inv_m
                      - mean * mean, 0.0)
    scale = g * lax.rsqrt(var + eps)
    shift = b - mean * scale
    return acc * scale + shift


# ---------------------------------------------------------------------------
# Pallas kernel 1 (hot path): bf16 matmul + fused BN affine (+res) + activation
# Single M block: batch statistics are fully known in the final-K epilogue.
# ---------------------------------------------------------------------------
def _mm_bn_act_kernel(a_ref, w_ref, g_ref, b_ref, o_ref, acc_ref, *,
                      m_real, act, slope, eps):
    @pl.when(pl.program_id(1) == 0)
    def _():
        acc_ref[...] = jnp.zeros_like(acc_ref)

    acc_ref[...] += jnp.dot(a_ref[...], w_ref[...],
                            preferred_element_type=jnp.float32)

    @pl.when(pl.program_id(1) == pl.num_programs(1) - 1)
    def _():
        z = _bn_affine(acc_ref[...], g_ref[...], b_ref[...], m_real, eps)
        o_ref[...] = _apply_act(z, act, slope).astype(o_ref.dtype)


def _mm_bn_act_res_kernel(a_ref, w_ref, g_ref, b_ref, r_ref, o_ref, acc_ref, *,
                          m_real, act, slope, eps):
    @pl.when(pl.program_id(1) == 0)
    def _():
        acc_ref[...] = jnp.zeros_like(acc_ref)

    acc_ref[...] += jnp.dot(a_ref[...], w_ref[...],
                            preferred_element_type=jnp.float32)

    @pl.when(pl.program_id(1) == pl.num_programs(1) - 1)
    def _():
        z = _bn_affine(acc_ref[...], g_ref[...], b_ref[...], m_real, eps)
        z = z + r_ref[...].astype(jnp.float32)
        o_ref[...] = _apply_act(z, act, slope).astype(o_ref.dtype)


def matmul_bn_act(a, w, gamma, beta, residual, tm, tk, tn, m_real, act, slope,
                  vmem_limit):
    Mp, Kp = a.shape
    _, Np = w.shape
    assert Mp == tm and Kp % tk == 0 and Np % tn == 0
    in_specs = [
        pl.BlockSpec((tm, tk), lambda j, k: (0, k)),
        pl.BlockSpec((tk, tn), lambda j, k: (k, j)),
        pl.BlockSpec((1, tn), lambda j, k: (0, j)),
        pl.BlockSpec((1, tn), lambda j, k: (0, j)),
    ]
    args = [a, w, gamma, beta]
    if residual is not None:
        in_specs.append(pl.BlockSpec((tm, tn), lambda j, k: (0, j)))
        args.append(residual)
        kern = functools.partial(_mm_bn_act_res_kernel, m_real=float(m_real),
                                 act=act, slope=float(slope), eps=1e-5)
    else:
        kern = functools.partial(_mm_bn_act_kernel, m_real=float(m_real),
                                 act=act, slope=float(slope), eps=1e-5)
    return pl.pallas_call(
        kern,
        out_shape=jax.ShapeDtypeStruct((Mp, Np), jnp.bfloat16),
        grid_spec=pltpu.PrefetchScalarGridSpec(
            num_scalar_prefetch=0,
            grid=(Np // tn, Kp // tk),
            in_specs=in_specs,
            out_specs=pl.BlockSpec((tm, tn), lambda j, k: (0, j)),
            scratch_shapes=[pltpu.VMEM((tm, tn), jnp.float32)],
        ),
        compiler_params=pltpu.CompilerParams(
            dimension_semantics=("parallel", "arbitrary"),
            vmem_limit_bytes=vmem_limit),
    )(*args)


# ---------------------------------------------------------------------------
# Pallas kernel 2 (fallback for M > 512): matmul + partial BN stats
# ---------------------------------------------------------------------------
def _mm_stats_kernel(a_ref, w_ref, o_ref, sum_ref, sq_ref, acc_ref):
    @pl.when(pl.program_id(2) == 0)
    def _():
        acc_ref[...] = jnp.zeros_like(acc_ref)

    acc_ref[...] += jnp.dot(a_ref[...], w_ref[...],
                            preferred_element_type=jnp.float32)

    @pl.when(pl.program_id(2) == pl.num_programs(2) - 1)
    def _():
        acc = acc_ref[...]
        o_ref[...] = acc.astype(o_ref.dtype)
        # Only row 0 is consumed host-side; rows 1..7 are left unwritten.
        sum_ref[0:1, :] = jnp.sum(acc, axis=0, keepdims=True)
        sq_ref[0:1, :] = jnp.sum(acc * acc, axis=0, keepdims=True)


def matmul_stats(a, w, tm, tk, tn, vmem_limit):
    Mp, Kp = a.shape
    _, Np = w.shape
    assert Mp % tm == 0 and Kp % tk == 0 and Np % tn == 0
    nmb = Mp // tm
    return pl.pallas_call(
        _mm_stats_kernel,
        out_shape=(jax.ShapeDtypeStruct((Mp, Np), jnp.bfloat16),
                   jax.ShapeDtypeStruct((8 * nmb, Np), jnp.float32),
                   jax.ShapeDtypeStruct((8 * nmb, Np), jnp.float32)),
        grid_spec=pltpu.PrefetchScalarGridSpec(
            num_scalar_prefetch=0,
            grid=(Mp // tm, Np // tn, Kp // tk),
            in_specs=[
                pl.BlockSpec((tm, tk), lambda i, j, k: (i, k)),
                pl.BlockSpec((tk, tn), lambda i, j, k: (k, j)),
            ],
            out_specs=[
                pl.BlockSpec((tm, tn), lambda i, j, k: (i, j)),
                pl.BlockSpec((8, tn), lambda i, j, k: (i, j)),
                pl.BlockSpec((8, tn), lambda i, j, k: (i, j)),
            ],
            scratch_shapes=[pltpu.VMEM((tm, tn), jnp.float32)],
        ),
        compiler_params=pltpu.CompilerParams(
            dimension_semantics=("parallel", "parallel", "arbitrary"),
            vmem_limit_bytes=vmem_limit),
    )(a, w)


# ---------------------------------------------------------------------------
# Pallas kernel 3 (fallback): BN-affine (+ optional residual) + activation
# scale / shift stay resident as one full-width block for the whole kernel.
# ---------------------------------------------------------------------------
def _affine_kernel(y_ref, s_ref, t_ref, o_ref, *, tn, act, slope):
    c0 = pl.multiple_of(pl.program_id(1) * tn, 128)
    s = s_ref[:, pl.ds(c0, tn)]
    t = t_ref[:, pl.ds(c0, tn)]
    z = y_ref[...].astype(jnp.float32) * s + t
    o_ref[...] = _apply_act(z, act, slope).astype(o_ref.dtype)


def _affine_res_kernel(y_ref, s_ref, t_ref, r_ref, o_ref, *, tn, act, slope):
    c0 = pl.multiple_of(pl.program_id(1) * tn, 128)
    s = s_ref[:, pl.ds(c0, tn)]
    t = t_ref[:, pl.ds(c0, tn)]
    z = (y_ref[...].astype(jnp.float32) * s + t
         + r_ref[...].astype(jnp.float32))
    o_ref[...] = _apply_act(z, act, slope).astype(o_ref.dtype)


def affine_act(y_pad, scale, shift, tm, tn, vmem_limit, residual_pad=None,
               act="relu", slope=0.25):
    Mp, Np = y_pad.shape
    in_specs = [
        pl.BlockSpec((tm, tn), lambda i, j: (i, j)),
        pl.BlockSpec((1, Np), lambda i, j: (0, 0)),   # resident, fetched once
        pl.BlockSpec((1, Np), lambda i, j: (0, 0)),
    ]
    args = [y_pad, scale, shift]
    if residual_pad is not None:
        in_specs.append(pl.BlockSpec((tm, tn), lambda i, j: (i, j)))
        args.append(residual_pad)
        kern = functools.partial(_affine_res_kernel, tn=tn, act=act,
                                 slope=float(slope))
    else:
        kern = functools.partial(_affine_kernel, tn=tn, act=act,
                                 slope=float(slope))
    return pl.pallas_call(
        kern,
        out_shape=jax.ShapeDtypeStruct((Mp, Np), jnp.bfloat16),
        grid_spec=pltpu.PrefetchScalarGridSpec(
            num_scalar_prefetch=0,
            grid=(Mp // tm, Np // tn),
            in_specs=in_specs,
            out_specs=pl.BlockSpec((tm, tn), lambda i, j: (i, j)),
        ),
        compiler_params=pltpu.CompilerParams(
            dimension_semantics=("parallel", "parallel"),
            vmem_limit_bytes=vmem_limit),
    )(*args)


# ---------------------------------------------------------------------------
# Glue: im2col (with exact all-zero-tap skipping), maxpool, conv+BN+act wrapper
# ---------------------------------------------------------------------------
def im2col(x, kh, kw, stride, padding, dilation):
    N, H, W, C = x.shape
    Hout = (H + 2 * padding - dilation * (kh - 1) - 1) // stride + 1
    Wout = (W + 2 * padding - dilation * (kw - 1) - 1) // stride + 1
    xp = jnp.pad(x, ((0, 0), (padding, padding), (padding, padding), (0, 0)))

    def tap_hits_data(off, out_len, size):
        # True iff any sampled index off + s*stride lands inside the original
        # (un-padded) extent [padding, padding + size).
        return any(padding <= off + s * stride < padding + size
                   for s in range(out_len))

    taps, kept = [], []
    for dy in range(kh):
        row_ok = tap_hits_data(dy * dilation, Hout, H)
        for dx in range(kw):
            if not (row_ok and tap_hits_data(dx * dilation, Wout, W)):
                continue      # window entirely in zero padding -> exact skip
            kept.append(dy * kw + dx)
            taps.append(xp[:,
                           dy * dilation: dy * dilation + (Hout - 1) * stride + 1: stride,
                           dx * dilation: dx * dilation + (Wout - 1) * stride + 1: stride,
                           :])
    col = jnp.stack(taps, axis=3)                      # (N,Hout,Wout,T,C)
    return col.reshape(N * Hout * Wout, len(kept) * C), Hout, Wout, kept


@functools.partial(jax.jit,
                   static_argnames=("stride", "padding", "dilation", "act",
                                    "prelu_slope"))
def conv_bn_act(x, w_hwio, gamma, beta, residual=None, *, stride=1, padding=0,
                dilation=1, act="relu", prelu_slope=0.25):
    """conv (no bias; BN cancels it) -> training-mode BN -> (+residual) -> act."""
    N = x.shape[0]
    kh, kw, cin, cout = w_hwio.shape
    col, Hout, Wout, kept = im2col(x, kh, kw, stride, padding, dilation)
    M, K = col.shape
    has_res = residual is not None
    tm, tk, tn, fused = _pick_tiles(M, K, cout, has_res)
    Mp, Kp, Np = _ru(M, tm), _ru(K, tk), _ru(cout, tn)
    _, vmem_limit = _vmem_budget_and_limit()

    a = col.astype(jnp.bfloat16)
    if Mp != M or Kp != K:
        a = jnp.pad(a, ((0, Mp - M), (0, Kp - K)))     # zero pad -> exact acc

    w2 = w_hwio.astype(jnp.bfloat16).reshape(kh * kw, cin, cout)
    if len(kept) < kh * kw:                            # drop all-zero taps
        w2 = jnp.take(w2, jnp.asarray(kept, jnp.int32), axis=0)
    w2 = w2.reshape(K, cout)
    if Kp != K or Np != cout:
        w2 = jnp.pad(w2, ((0, Kp - K), (0, Np - cout)))

    g = gamma.astype(jnp.float32)
    b = beta.astype(jnp.float32)
    if Np != cout:
        g = jnp.pad(g, (0, Np - cout))
        b = jnp.pad(b, (0, Np - cout))
    g = g.reshape(1, Np)
    b = b.reshape(1, Np)

    res_pad = None
    if has_res:
        r = residual.reshape(N * Hout * Wout, cout).astype(jnp.bfloat16)
        if Mp != M or Np != cout:
            r = jnp.pad(r, ((0, Mp - M), (0, Np - cout)))
        res_pad = r

    if fused:
        # Single M block: BN stats + affine + residual + activation all live in
        # the matmul epilogue (one pallas_call, no y round-trip through HBM).
        out = matmul_bn_act(a, w2, g, b, res_pad, tm, tk, tn, M, act,
                            prelu_slope, vmem_limit)
    else:
        y_pad, sums, sqs = matmul_stats(a, w2, tm, tk, tn, vmem_limit)
        nmb = Mp // tm
        col_sum = sums.reshape(nmb, 8, Np)[:, 0, :].sum(axis=0)
        col_sq = sqs.reshape(nmb, 8, Np)[:, 0, :].sum(axis=0)
        mean = col_sum / M
        var = jnp.maximum(col_sq / M - mean * mean, 0.0)
        scale = g[0] * lax.rsqrt(var + 1e-5)
        shift = b[0] - mean * scale
        out = affine_act(y_pad, scale.reshape(1, Np), shift.reshape(1, Np),
                         tm, tn, vmem_limit, residual_pad=res_pad,
                         act=act, slope=prelu_slope)
    return out[:M, :cout].reshape(N, Hout, Wout, cout)


def maxpool_ceil(x, k=3, stride=2, padding=1):
    # TODO(synk): maxpool done with lax.reduce_window (plain JAX glue), not Pallas.
    N, H, W, C = x.shape

    def outsize(L):
        out = -(-(L + 2 * padding - k) // stride) + 1
        if (out - 1) * stride >= L + padding:     # PyTorch ceil_mode rule
            out -= 1
        return out

    Ho, Wo = outsize(H), outsize(W)
    pad_h = (Ho - 1) * stride + k - H - padding
    pad_w = (Wo - 1) * stride + k - W - padding
    neg_inf = jnp.asarray(-jnp.inf, x.dtype)
    xp = jnp.pad(x, ((0, 0), (padding, max(pad_h, 0)),
                     (padding, max(pad_w, 0)), (0, 0)),
                 constant_values=neg_inf)
    return lax.reduce_window(xp, neg_inf, lax.max,
                             window_dimensions=(1, k, k, 1),
                             window_strides=(1, stride, stride, 1),
                             padding="VALID")


# ---------------------------------------------------------------------------
# Bottleneck block / ASPP / DeepLab forward
# ---------------------------------------------------------------------------
def bottleneck_forward(x, p):
    out = conv_bn_act(x, p["w1"], p["g1"], p["b1"],
                      stride=p["stride"], act="relu")
    out = conv_bn_act(out, p["w2"], p["g2"], p["b2"],
                      padding=p["dilation"], dilation=p["dilation"], act="relu")
    if "wd" in p:
        residual = conv_bn_act(x, p["wd"], p["gd"], p["bd"],
                               stride=p["stride"], act="none")
    else:
        residual = x
    # conv3 + bn3 + residual add + relu, fused into the matmul epilogue
    out = conv_bn_act(out, p["w3"], p["g3"], p["b3"],
                      residual=residual, act="relu")
    return out


def aspp_forward(x, p):
    N, H, W, _ = x.shape
    # global average pool -> 1x1 conv -> BN -> ReLU  (GAP is plain JAX glue)
    gap = jnp.mean(x.astype(jnp.float32), axis=(1, 2), keepdims=True)
    gap = gap.astype(jnp.bfloat16)
    img = conv_bn_act(gap, p["wc"], p["gc"], p["btc"], act="relu")
    # bilinear, align_corners=True, from 1x1 -> HxW degenerates to a broadcast
    img = jnp.broadcast_to(img, (N, H, W, img.shape[-1]))

    out0 = conv_bn_act(x, p["w0"], p["g0"], p["bt0"], act="relu")
    out1 = conv_bn_act(x, p["w1"], p["g1"], p["bt1"],
                       padding=6, dilation=6, act="relu")
    out2 = conv_bn_act(x, p["w2"], p["g2"], p["bt2"],
                       padding=12, dilation=12, act="relu")
    out3 = conv_bn_act(x, p["w3"], p["g3"], p["bt3"],
                       padding=18, dilation=18, act="relu")

    cat = jnp.concatenate([img, out0, out1, out2, out3], axis=-1)
    out = conv_bn_act(cat, p["wb"], p["gb"], p["btb"],
                      padding=1, act="prelu", prelu_slope=p["prelu"])
    return out


def deeplab_forward(x_nchw, params):
    input_size = x_nchw.shape[2:]
    x = jnp.transpose(x_nchw, (0, 2, 3, 1)).astype(jnp.bfloat16)  # NCHW -> NHWC
    x = conv_bn_act(x, params["conv1_w"], params["bn1_g"], params["bn1_b"],
                    stride=2, padding=3, act="relu")
    x = maxpool_ceil(x, k=3, stride=2, padding=1)
    for blk in params["layer1"]:
        x = bottleneck_forward(x, blk)
    for blk in params["layer2"]:
        x = bottleneck_forward(x, blk)
    for blk in params["layer3"]:
        x = bottleneck_forward(x, blk)
    for blk in params["layer4"]:
        x = bottleneck_forward(x, blk)
    out = aspp_forward(x, params["aspp"])
    out = jnp.transpose(out, (0, 3, 1, 2)).astype(jnp.float32)    # back to NCHW
    return out, input_size


# ---------------------------------------------------------------------------
# Deterministic parameter construction (shapes follow the module's __init__).
# Conv weights are pre-cast to bf16 (MXU operand dtype); conv biases are
# omitted because training-mode BatchNorm cancels them exactly.
# ---------------------------------------------------------------------------
def init_params(key, layers=(1, 1, 1, 1), depth=512):
    keys = iter(jax.random.split(key, 256))

    def nk():
        return next(keys)

    def w(kh, kw, cin, cout):
        return (0.01 * jax.random.normal(nk(), (kh, kw, cin, cout),
                                         jnp.float32)).astype(jnp.bfloat16)

    params = {"conv1_w": w(7, 7, 3, 64),
              "bn1_g": jnp.ones((64,), jnp.float32),
              "bn1_b": jnp.zeros((64,), jnp.float32)}

    inplanes = [64]

    def make_layer(planes, blocks, stride=1, dilation=1):
        blks = []
        p = {"stride": stride, "dilation": dilation,
             "w1": w(1, 1, inplanes[0], planes),
             "g1": jnp.ones((planes,)), "b1": jnp.zeros((planes,)),
             "w2": w(3, 3, planes, planes),
             "g2": jnp.ones((planes,)), "b2": jnp.zeros((planes,)),
             "w3": w(1, 1, planes, planes * 4),
             "g3": jnp.ones((planes * 4,)), "b3": jnp.zeros((planes * 4,)),
             "wd": w(1, 1, inplanes[0], planes * 4),
             "gd": jnp.ones((planes * 4,)), "bd": jnp.zeros((planes * 4,))}
        blks.append(p)
        inplanes[0] = planes * 4
        for _ in range(1, blocks):
            q = {"stride": 1, "dilation": dilation,
                 "w1": w(1, 1, inplanes[0], planes),
                 "g1": jnp.ones((planes,)), "b1": jnp.zeros((planes,)),
                 "w2": w(3, 3, planes, planes),
                 "g2": jnp.ones((planes,)), "b2": jnp.zeros((planes,)),
                 "w3": w(1, 1, planes, planes * 4),
                 "g3": jnp.ones((planes * 4,)), "b3": jnp.zeros((planes * 4,))}
            blks.append(q)
        return blks

    params["layer1"] = make_layer(64, layers[0])
    params["layer2"] = make_layer(128, layers[1], stride=2)
    params["layer3"] = make_layer(256, layers[2], stride=1, dilation=2)
    params["layer4"] = make_layer(512, layers[3], stride=1, dilation=4)

    a = {"wc": w(1, 1, 2048, depth),
         "gc": jnp.ones((depth,)), "btc": jnp.zeros((depth,)),
         "w0": w(1, 1, 2048, depth),
         "g0": jnp.ones((depth,)), "bt0": jnp.zeros((depth,)),
         "w1": w(3, 3, 2048, depth),
         "g1": jnp.ones((depth,)), "bt1": jnp.zeros((depth,)),
         "w2": w(3, 3, 2048, depth),
         "g2": jnp.ones((depth,)), "bt2": jnp.zeros((depth,)),
         "w3": w(3, 3, 2048, depth),
         "g3": jnp.ones((depth,)), "bt3": jnp.zeros((depth,)),
         "wb": w(3, 3, depth * 5, 256),
         "gb": jnp.ones((256,)), "btb": jnp.zeros((256,)),
         "prelu": 0.25}
    params["aspp"] = a
    return params


if __name__ == "__main__":
    key = jax.random.PRNGKey(0)
    pkey, xkey = jax.random.split(key)
    params = init_params(pkey, layers=(1, 1, 1, 1), depth=512)

    # PyTorch-style NCHW input, small spatial size
    x = jax.random.normal(xkey, (2, 3, 32, 32), jnp.float32)

    out, input_size = deeplab_forward(x, params)
    out = jax.block_until_ready(out)

    assert out.shape == (2, 256, 5, 5), out.shape
    assert tuple(input_size) == (32, 32)
    assert bool(jnp.all(jnp.isfinite(out)))
    print("KERNEL_OK")
</pallas_src>

<mosaic_0001>
module attributes {stable_mosaic.version = 11 : i64} {
  func.func @_mm_bn_act_kernel(%arg0: i32, %arg1: i32, %arg2: memref<512x256xbf16, #tpu.memory_space<vmem>>, %arg3: memref<256x128xbf16, #tpu.memory_space<vmem>>, %arg4: memref<1x128xf32, #tpu.memory_space<vmem>>, %arg5: memref<1x128xf32, #tpu.memory_space<vmem>>, %arg6: memref<512x128xbf16, #tpu.memory_space<vmem>>, %arg7: memref<512x128xf32, #tpu.memory_space<vmem>>) attributes {dimension_semantics = [#tpu.dimension_semantics<parallel>, #tpu.dimension_semantics<arbitrary>], iteration_bounds = array<i64: 1, 1>, scalar_prefetch = 0 : i64, scratch_operands = 1 : i64, tpu.core_type = #tpu.core_type<tc>, window_params = [{transform_indices = @transform_0, window_bounds = array<i64: 512, 256>}, {transform_indices = @transform_1, window_bounds = array<i64: 256, 128>}, {transform_indices = @transform_2, window_bounds = array<i64: 1, 128>}, {transform_indices = @transform_3, window_bounds = array<i64: 1, 128>}, {transform_indices = @transform_4, window_bounds = array<i64: 512, 128>}]} {
    %c0_i32 = arith.constant 0 : i32
    %0 = arith.cmpi eq, %arg1, %c0_i32 : i32
    %1 = arith.extui %0 : i1 to i32
    %c0_i32_0 = arith.constant 0 : i32
    %2 = arith.cmpi ne, %1, %c0_i32_0 : i32
    scf.if %2 {
      %cst_10 = arith.constant 0.000000e+00 : f32
      %12 = vector.broadcast %cst_10 : f32 to vector<512x128xf32>
      %c0_11 = arith.constant 0 : index
      %c0_12 = arith.constant 0 : index
      %13 = vector.load %arg7[%c0_11, %c0_12] : memref<512x128xf32, #tpu.memory_space<vmem>>, vector<512x128xf32>
      tpu.vector_store %arg7[%c0_11, %c0_12], %12 {strides = array<i32>} : memref<512x128xf32, #tpu.memory_space<vmem>>, vector<512x128xf32>,
    } else {
    }
    %c0 = arith.constant 0 : index
    %c0_1 = arith.constant 0 : index
    %3 = vector.load %arg7[%c0, %c0_1] : memref<512x128xf32, #tpu.memory_space<vmem>>, vector<512x128xf32>
    %c0_2 = arith.constant 0 : index
    %c0_3 = arith.constant 0 : index
    %4 = vector.load %arg2[%c0_2, %c0_3] : memref<512x256xbf16, #tpu.memory_space<vmem>>, vector<512x256xbf16>
    %c0_4 = arith.constant 0 : index
    %c0_5 = arith.constant 0 : index
    %5 = vector.load %arg3[%c0_4, %c0_5] : memref<256x128xbf16, #tpu.memory_space<vmem>>, vector<256x128xbf16>
    %cst = arith.constant dense<0.000000e+00> : vector<512x128xf32>
    %6 = tpu.matmul %4, %5, %cst {dimension_numbers = #tpu.dot_dimension_numbers<[1], [0], [0], [1], [0, 0, 1, 1], [], []>} : vector<512x256xbf16>, vector<256x128xbf16>, vector<512x128xf32> -> vector<512x128xf32>
    %7 = arith.addf %3, %6 : vector<512x128xf32>
    %c0_6 = arith.constant 0 : index
    %c0_7 = arith.constant 0 : index
    %8 = vector.load %arg7[%c0_6, %c0_7] : memref<512x128xf32, #tpu.memory_space<vmem>>, vector<512x128xf32>
    tpu.vector_store %arg7[%c0_6, %c0_7], %7 {strides = array<i32>} : memref<512x128xf32, #tpu.memory_space<vmem>>, vector<512x128xf32>,
    %c0_i32_8 = arith.constant 0 : i32
    %9 = arith.cmpi eq, %arg1, %c0_i32_8 : i32
    %10 = arith.extui %9 : i1 to i32
    %c0_i32_9 = arith.constant 0 : i32
    %11 = arith.cmpi ne, %10, %c0_i32_9 : i32
    scf.if %11 {
      %c0_10 = arith.constant 0 : index
      %c0_11 = arith.constant 0 : index
      %12 = vector.load %arg7[%c0_10, %c0_11] : memref<512x128xf32, #tpu.memory_space<vmem>>, vector<512x128xf32>
      %c0_12 = arith.constant 0 : index
      %c0_13 = arith.constant 0 : index
      %13 = vector.load %arg4[%c0_12, %c0_13] : memref<1x128xf32, #tpu.memory_space<vmem>>, vector<1x128xf32>
      %c0_14 = arith.constant 0 : index
      %c0_15 = arith.constant 0 : index
      %14 = vector.load %arg5[%c0_14, %c0_15] : memref<1x128xf32, #tpu.memory_space<vmem>>, vector<1x128xf32>
      %cst_16 = arith.constant dense<0.000000e+00> : vector<128xf32>
      %15 = vector.multi_reduction <add>, %12, %cst_16 [0] : vector<512x128xf32> to vector<128xf32>
      %16 = vector.shape_cast %15 : vector<128xf32> to vector<1x128xf32>
      %cst_17 = arith.constant 0.001953125 : f32
      %17 = vector.broadcast %cst_17 : f32 to vector<1x128xf32>
      %18 = arith.mulf %16, %17 : vector<1x128xf32>
      %19 = arith.mulf %12, %12 : vector<512x128xf32>
      %cst_18 = arith.constant dense<0.000000e+00> : vector<128xf32>
      %20 = vector.multi_reduction <add>, %19, %cst_18 [0] : vector<512x128xf32> to vector<128xf32>
      %21 = vector.shape_cast %20 : vector<128xf32> to vector<1x128xf32>
      %cst_19 = arith.constant 0.001953125 : f32
      %22 = vector.broadcast %cst_19 : f32 to vector<1x128xf32>
      %23 = arith.mulf %21, %22 : vector<1x128xf32>
      %24 = arith.mulf %18, %18 : vector<1x128xf32>
      %25 = arith.subf %23, %24 : vector<1x128xf32>
      %cst_20 = arith.constant 0.000000e+00 : f32
      %26 = vector.broadcast %cst_20 : f32 to vector<1x128xf32>
      %27 = arith.maximumf %25, %26 : vector<1x128xf32>
      %cst_21 = arith.constant 9.99999974E-6 : f32
      %28 = vector.broadcast %cst_21 : f32 to vector<1x128xf32>
      %29 = arith.addf %27, %28 : vector<1x128xf32>
      %30 = math.rsqrt %29 : vector<1x128xf32>
      %31 = arith.mulf %13, %30 : vector<1x128xf32>
      %32 = arith.mulf %18, %31 : vector<1x128xf32>
      %33 = arith.subf %14, %32 : vector<1x128xf32>
      %34 = vector.broadcast %31 : vector<1x128xf32> to vector<512x128xf32>
      %35 = arith.mulf %12, %34 : vector<512x128xf32>
      %36 = vector.broadcast %33 : vector<1x128xf32> to vector<512x128xf32>
      %37 = arith.addf %35, %36 : vector<512x128xf32>
      %cst_22 = arith.constant 0.000000e+00 : f32
      %38 = vector.broadcast %cst_22 : f32 to vector<512x128xf32>
      %39 = arith.maximumf %37, %38 : vector<512x128xf32>
      %40 = arith.truncf %39 : vector<512x128xf32> to vector<512x128xbf16>
      %c0_23 = arith.constant 0 : index
      %c0_24 = arith.constant 0 : index
      %41 = vector.load %arg6[%c0_23, %c0_24] : memref<512x128xbf16, #tpu.memory_space<vmem>>, vector<512x128xbf16>
      tpu.vector_store %arg6[%c0_23, %c0_24], %40 {strides = array<i32>} : memref<512x128xbf16, #tpu.memory_space<vmem>>, vector<512x128xbf16>,
    } else {
    }
    return
  }
  func.func @transform_0(%arg0: i32, %arg1: i32) -> (i32, i32) {
    %c0_i32 = arith.constant 0 : i32
    %c0_i32_0 = arith.constant 0 : i32
    return %c0_i32, %arg1 : i32, i32
  }
  func.func @transform_1(%arg0: i32, %arg1: i32) -> (i32, i32) {
    %c0_i32 = arith.constant 0 : i32
    return %arg1, %arg0 : i32, i32
  }
  func.func @transform_2(%arg0: i32, %arg1: i32) -> (i32, i32) {
    %c0_i32 = arith.constant 0 : i32
    %c0_i32_0 = arith.constant 0 : i32
    return %c0_i32, %arg0 : i32, i32
  }
  func.func @transform_3(%arg0: i32, %arg1: i32) -> (i32, i32) {
    %c0_i32 = arith.constant 0 : i32
    %c0_i32_0 = arith.constant 0 : i32
    return %c0_i32, %arg0 : i32, i32
  }
  func.func @transform_4(%arg0: i32, %arg1: i32) -> (i32, i32) {
    %c0_i32 = arith.constant 0 : i32
    %c0_i32_0 = arith.constant 0 : i32
    return %c0_i32, %arg0 : i32, i32
  }
}

</mosaic_0001>

<llo_original>
// kernel: conv_bn_act.1
$region0: #{conv_bn_act.1}
  #allocation0 [shape = 'u32[]', space=smem, size = 0x4, offset = 0x4, fixed_abs, tag = 'smem constant byte address 0x4 - core index']
  #allocation1 [shape = 'u32[72,128]{1,0:T(1,128)}', space=vmem, size = 0x9000, scoped, tag = 'internal scratch']
  #allocation2 [shape = 'f32[512,128]{1,0:T(8,128)}', space=vmem, size = 0x40000, scoped, tag = 'scratch operand']
  %s0 = inlined_call_operand.vmem [shape: bf16[512,256], index: 0, kind: input, shape index: {}]
  %s1 = inlined_call_operand.vmem [shape: bf16[256,128], index: 1, kind: input, shape index: {}]
  %s2 = inlined_call_operand.vmem [shape: f32[1,128], index: 2, kind: input, shape index: {}]
  %s3 = inlined_call_operand.vmem [shape: f32[1,128], index: 3, kind: input, shape index: {}]
  %s4 = inlined_call_operand.hbm [shape: bf16[512,128], index: 4, kind: output, shape index: {}]
  %s5 = sld [smem:[#allocation0]]
  $region34: #{conv_bn_act.1} parent=0
    _
  %s7 = ssub.s32 1, %s5
  %s8 = scalar_select 0, %s7, %s5
  $region1: #{conv_bn_act.1} parent=0
    #allocation3 [shape = 'u8[131072]{0}', space=vmem, size = 0x20000, scoped, tag = 'output window, operand 0, single buffered']
    #allocation4 [shape = 's32[1]{0}', space=sflag, size = 0x4, scoped, tag = 'scoped memory for conv_bn_act.1']
    %9 = vsyncpa [#allocation4], 0
    // Predicated region
    $region2: #{conv_bn_act.1} parent=1 // pred_check
      _
    $region3: #{conv_bn_act.1} parent=1 // pred_check_branch
      %11 = sbr.rel (0) target = $region5
    $region4: #{conv_bn_act.1} parent=1 // pred_region
      _
    $region5: #{conv_bn_act.1} parent=1 // pred_fallthru
      _
    // Predicated region
    $region6: #{conv_bn_act.1} parent=1 // pred_check
      _
    $region7: #{conv_bn_act.1} parent=1 // pred_check_branch
      %13 = sbr.rel (0) target = $region9
    $region8: #{conv_bn_act.1} parent=1 // pred_region
      _
    $region9: #{conv_bn_act.1} parent=1 // pred_fallthru
      _
    // Predicated region
    $region10: #{conv_bn_act.1} parent=1 // pred_check
      _
    $region11: #{conv_bn_act.1} parent=1 // pred_check_branch
      %15 = sbr.rel (0) target = $region13
    $region12: #{conv_bn_act.1} parent=1 // pred_region
      _
    $region13: #{conv_bn_act.1} parent=1 // pred_fallthru
      _
    // Predicated region
    $region14: #{conv_bn_act.1} parent=1 // pred_check
      _
    $region15: #{conv_bn_act.1} parent=1 // pred_check_branch
      %17 = sbr.rel (0) target = $region17
    $region16: #{conv_bn_act.1} parent=1 // pred_region
      _
    $region17: #{conv_bn_act.1} parent=1 // pred_fallthru
      _
    %p18 = scmp.eq.s32.totalorder 0, 0
    // Predicated region
    $region18: #{conv_bn_act.1} parent=1 // pred_check
      %p19 = pneg %p18
    $region19: #{conv_bn_act.1} parent=1 // pred_check_branch
      %21 = sbr.rel (%p19) target = $region21
    $region20: #{conv_bn_act.1} parent=1 // pred_region
      %22 = vst [vmem:[#allocation2] sm:$0xff] 0.0
      %23 = vst [vmem:[#allocation2 + $0x8] sm:$0xff] 0.0
      %24 = vst [vmem:[#allocation2 + $0x10] sm:$0xff] 0.0
      %25 = vst [vmem:[#allocation2 + $0x18] sm:$0xff] 0.0
      %26 = vst [vmem:[#allocation2 + $0x20] sm:$0xff] 0.0
      %27 = vst [vmem:[#allocation2 + $0x28] sm:$0xff] 0.0
      %28 = vst [vmem:[#allocation2 + $0x30] sm:$0xff] 0.0
      %29 = vst [vmem:[#allocation2 + $0x38] sm:$0xff] 0.0
      %30 = vst [vmem:[#allocation2 + $0x40] sm:$0xff] 0.0
      %31 = vst [vmem:[#allocation2 + $0x48] sm:$0xff] 0.0
      %32 = vst [vmem:[#allocation2 + $0x50] sm:$0xff] 0.0
      %33 = vst [vmem:[#allocation2 + $0x58] sm:$0xff] 0.0
      %34 = vst [vmem:[#allocation2 + $0x60] sm:$0xff] 0.0
      %35 = vst [vmem:[#allocation2 + $0x68] sm:$0xff] 0.0
      %36 = vst [vmem:[#allocation2 + $0x70] sm:$0xff] 0.0
      %37 = vst [vmem:[#allocation2 + $0x78] sm:$0xff] 0.0
      %38 = vst [vmem:[#allocation2 + $0x80] sm:$0xff] 0.0
      %39 = vst [vmem:[#allocation2 + $0x88] sm:$0xff] 0.0
      %40 = vst [vmem:[#allocation2 + $0x90] sm:$0xff] 0.0
      %41 = vst [vmem:[#allocation2 + $0x98] sm:$0xff] 0.0
      %42 = vst [vmem:[#allocation2 + $0xa0] sm:$0xff] 0.0
      %43 = vst [vmem:[#allocation2 + $0xa8] sm:$0xff] 0.0
      %44 = vst [vmem:[#allocation2 + $0xb0] sm:$0xff] 0.0
      %45 = vst [vmem:[#allocation2 + $0xb8] sm:$0xff] 0.0
      %46 = vst [vmem:[#allocation2 + $0xc0] sm:$0xff] 0.0
      %47 = vst [vmem:[#allocation2 + $0xc8] sm:$0xff] 0.0
      %48 = vst [vmem:[#allocation2 + $0xd0] sm:$0xff] 0.0
      %49 = vst [vmem:[#allocation2 + $0xd8] sm:$0xff] 0.0
      %50 = vst [vmem:[#allocation2 + $0xe0] sm:$0xff] 0.0
      %51 = vst [vmem:[#allocation2 + $0xe8] sm:$0xff] 0.0
      %52 = vst [vmem:[#allocation2 + $0xf0] sm:$0xff] 0.0
      %53 = vst [vmem:[#allocation2 + $0xf8] sm:$0xff] 0.0
      %54 = vst [vmem:[#allocation2 + $0x100] sm:$0xff] 0.0
      %55 = vst [vmem:[#allocation2 + $0x108] sm:$0xff] 0.0
      %56 = vst [vmem:[#allocation2 + $0x110] sm:$0xff] 0.0
      %57 = vst [vmem:[#allocation2 + $0x118] sm:$0xff] 0.0
      %58 = vst [vmem:[#allocation2 + $0x120] sm:$0xff] 0.0
      %59 = vst [vmem:[#allocation2 + $0x128] sm:$0xff] 0.0
      %60 = vst [vmem:[#allocation2 + $0x130] sm:$0xff] 0.0
      %61 = vst [vmem:[#allocation2 + $0x138] sm:$0xff] 0.0
      %62 = vst [vmem:[#allocation2 + $0x140] sm:$0xff] 0.0
      %63 = vst [vmem:[#allocation2 + $0x148] sm:$0xff] 0.0
      %64 = vst [vmem:[#allocation2 + $0x150] sm:$0xff] 0.0
      %65 = vst [vmem:[#allocation2 + $0x158] sm:$0xff] 0.0
      %66 = vst [vmem:[#allocation2 + $0x160] sm:$0xff] 0.0
      %67 = vst [vmem:[#allocation2 + $0x168] sm:$0xff] 0.0
      %68 = vst [vmem:[#allocation2 + $0x170] sm:$0xff] 0.0
      %69 = vst [vmem:[#allocation2 + $0x178] sm:$0xff] 0.0
      %70 = vst [vmem:[#allocation2 + $0x180] sm:$0xff] 0.0
      %71 = vst [vmem:[#allocation2 + $0x188] sm:$0xff] 0.0
      %72 = vst [vmem:[#allocation2 + $0x190] sm:$0xff] 0.0
      %73 = vst [vmem:[#allocation2 + $0x198] sm:$0xff] 0.0
      %74 = vst [vmem:[#allocation2 + $0x1a0] sm:$0xff] 0.0
      %75 = vst [vmem:[#allocation2 + $0x1a8] sm:$0xff] 0.0
      %76 = vst [vmem:[#allocation2 + $0x1b0] sm:$0xff] 0.0
      %77 = vst [vmem:[#allocation2 + $0x1b8] sm:$0xff] 0.0
      %78 = vst [vmem:[#allocation2 + $0x1c0] sm:$0xff] 0.0
      %79 = vst [vmem:[#allocation2 + $0x1c8] sm:$0xff] 0.0
      %80 = vst [vmem:[#allocation2 + $0x1d0] sm:$0xff] 0.0
      %81 = vst [vmem:[#allocation2 + $0x1d8] sm:$0xff] 0.0
      %82 = vst [vmem:[#allocation2 + $0x1e0] sm:$0xff] 0.0
      %83 = vst [vmem:[#allocation2 + $0x1e8] sm:$0xff] 0.0
      %84 = vst [vmem:[#allocation2 + $0x1f0] sm:$0xff] 0.0
      %85 = vst [vmem:[#allocation2 + $0x1f8] sm:$0xff] 0.0
    $region21: #{conv_bn_act.1} parent=1 // pred_fallthru
      _
    %v86 = vld [vmem:[#allocation2] sm:$0xff]
    %v87 = vld [vmem:[#allocation2 + $0x8] sm:$0xff]
    %v88 = vld [vmem:[#allocation2 + $0x10] sm:$0xff]
    %v89 = vld [vmem:[#allocation2 + $0x18] sm:$0xff]
    %v90 = vld [vmem:[#allocation2 + $0x20] sm:$0xff]
    %v91 = vld [vmem:[#allocation2 + $0x28] sm:$0xff]
    %v92 = vld [vmem:[#allocation2 + $0x30] sm:$0xff]
    %v93 = vld [vmem:[#allocation2 + $0x38] sm:$0xff]
    %v94 = vld [vmem:[#allocation2 + $0x40] sm:$0xff]
    %v95 = vld [vmem:[#allocation2 + $0x48] sm:$0xff]
    %v96 = vld [vmem:[#allocation2 + $0x50] sm:$0xff]
    %v97 = vld [vmem:[#allocation2 + $0x58] sm:$0xff]
    %v98 = vld [vmem:[#allocation2 + $0x60] sm:$0xff]
    %v99 = vld [vmem:[#allocation2 + $0x68] sm:$0xff]
    %v100 = vld [vmem:[#allocation2 + $0x70] sm:$0xff]
    %v101 = vld [vmem:[#allocation2 + $0x78] sm:$0xff]
    %v102 = vld [vmem:[#allocation2 + $0x80] sm:$0xff]
    %v103 = vld [vmem:[#allocation2 + $0x88] sm:$0xff]
    %v104 = vld [vmem:[#allocation2 + $0x90] sm:$0xff]
    %v105 = vld [vmem:[#allocation2 + $0x98] sm:$0xff]
    %v106 = vld [vmem:[#allocation2 + $0xa0] sm:$0xff]
    %v107 = vld [vmem:[#allocation2 + $0xa8] sm:$0xff]
    %v108 = vld [vmem:[#allocation2 + $0xb0] sm:$0xff]
    %v109 = vld [vmem:[#allocation2 + $0xb8] sm:$0xff]
    %v110 = vld [vmem:[#allocation2 + $0xc0] sm:$0xff]
    %v111 = vld [vmem:[#allocation2 + $0xc8] sm:$0xff]
    %v112 = vld [vmem:[#allocation2 + $0xd0] sm:$0xff]
    %v113 = vld [vmem:[#allocation2 + $0xd8] sm:$0xff]
    %v114 = vld [vmem:[#allocation2 + $0xe0] sm:$0xff]
    %v115 = vld [vmem:[#allocation2 + $0xe8] sm:$0xff]
    %v116 = vld [vmem:[#allocation2 + $0xf0] sm:$0xff]
    %v117 = vld [vmem:[#allocation2 + $0xf8] sm:$0xff]
    %v118 = vld [vmem:[#allocation2 + $0x100] sm:$0xff]
    %v119 = vld [vmem:[#allocation2 + $0x108] sm:$0xff]
    %v120 = vld [vmem:[#allocation2 + $0x110] sm:$0xff]
    %v121 = vld [vmem:[#allocation2 + $0x118] sm:$0xff]
    %v122 = vld [vmem:[#allocation2 + $0x120] sm:$0xff]
    %v123 = vld [vmem:[#allocation2 + $0x128] sm:$0xff]
    %v124 = vld [vmem:[#allocation2 + $0x130] sm:$0xff]
    %v125 = vld [vmem:[#allocation2 + $0x138] sm:$0xff]
    %v126 = vld [vmem:[#allocation2 + $0x140] sm:$0xff]
    %v127 = vld [vmem:[#allocation2 + $0x148] sm:$0xff]
    %v128 = vld [vmem:[#allocation2 + $0x150] sm:$0xff]
    %v129 = vld [vmem:[#allocation2 + $0x158] sm:$0xff]
    %v130 = vld [vmem:[#allocation2 + $0x160] sm:$0xff]
    %v131 = vld [vmem:[#allocation2 + $0x168] sm:$0xff]
    %v132 = vld [vmem:[#allocation2 + $0x170] sm:$0xff]
    %v133 = vld [vmem:[#allocation2 + $0x178] sm:$0xff]
    %v134 = vld [vmem:[#allocation2 + $0x180] sm:$0xff]
    %v135 = vld [vmem:[#allocation2 + $0x188] sm:$0xff]
    %v136 = vld [vmem:[#allocation2 + $0x190] sm:$0xff]
    %v137 = vld [vmem:[#allocation2 + $0x198] sm:$0xff]
    %v138 = vld [vmem:[#allocation2 + $0x1a0] sm:$0xff]
    %v139 = vld [vmem:[#allocation2 + $0x1a8] sm:$0xff]
    %v140 = vld [vmem:[#allocation2 + $0x1b0] sm:$0xff]
    %v141 = vld [vmem:[#allocation2 + $0x1b8] sm:$0xff]
    %v142 = vld [vmem:[#allocation2 + $0x1c0] sm:$0xff]
    %v143 = vld [vmem:[#allocation2 + $0x1c8] sm:$0xff]
    %v144 = vld [vmem:[#allocation2 + $0x1d0] sm:$0xff]
    %v145 = vld [vmem:[#allocation2 + $0x1d8] sm:$0xff]
    %v146 = vld [vmem:[#allocation2 + $0x1e0] sm:$0xff]
    %v147 = vld [vmem:[#allocation2 + $0x1e8] sm:$0xff]
    %v148 = vld [vmem:[#allocation2 + $0x1f0] sm:$0xff]
    %v149 = vld [vmem:[#allocation2 + $0x1f8] sm:$0xff]
    %v150 = vld [vmem:[%s0] sm:$0xff]
    %v151 = vld [vmem:[%s0 + $0x8] sm:$0xff]
    %v152 = vld [vmem:[%s0 + $0x10] sm:$0xff]
    %v153 = vld [vmem:[%s0 + $0x18] sm:$0xff]
    %v154 = vld [vmem:[%s0 + $0x20] sm:$0xff]
    %v155 = vld [vmem:[%s0 + $0x28] sm:$0xff]
    %v156 = vld [vmem:[%s0 + $0x30] sm:$0xff]
    %v157 = vld [vmem:[%s0 + $0x38] sm:$0xff]
    %v158 = vld [vmem:[%s0 + $0x40] sm:$0xff]
    %v159 = vld [vmem:[%s0 + $0x48] sm:$0xff]
    %v160 = vld [vmem:[%s0 + $0x50] sm:$0xff]
    %v161 = vld [vmem:[%s0 + $0x58] sm:$0xff]
    %v162 = vld [vmem:[%s0 + $0x60] sm:$0xff]
    %v163 = vld [vmem:[%s0 + $0x68] sm:$0xff]
    %v164 = vld [vmem:[%s0 + $0x70] sm:$0xff]
    %v165 = vld [vmem:[%s0 + $0x78] sm:$0xff]
    %v166 = vld [vmem:[%s0 + $0x80] sm:$0xff]
    %v167 = vld [vmem:[%s0 + $0x88] sm:$0xff]
    %v168 = vld [vmem:[%s0 + $0x90] sm:$0xff]
    %v169 = vld [vmem:[%s0 + $0x98] sm:$0xff]
    %v170 = vld [vmem:[%s0 + $0xa0] sm:$0xff]
    %v171 = vld [vmem:[%s0 + $0xa8] sm:$0xff]
    %v172 = vld [vmem:[%s0 + $0xb0] sm:$0xff]
    %v173 = vld [vmem:[%s0 + $0xb8] sm:$0xff]
    %v174 = vld [vmem:[%s0 + $0xc0] sm:$0xff]
    %v175 = vld [vmem:[%s0 + $0xc8] sm:$0xff]
    %v176 = vld [vmem:[%s0 + $0xd0] sm:$0xff]
    %v177 = vld [vmem:[%s0 + $0xd8] sm:$0xff]
    %v178 = vld [vmem:[%s0 + $0xe0] sm:$0xff]
    %v179 = vld [vmem:[%s0 + $0xe8] sm:$0xff]
    %v180 = vld [vmem:[%s0 + $0xf0] sm:$0xff]
    %v181 = vld [vmem:[%s0 + $0xf8] sm:$0xff]
    %v182 = vld [vmem:[%s0 + $0x100] sm:$0xff]
    %v183 = vld [vmem:[%s0 + $0x108] sm:$0xff]
    %v184 = vld [vmem:[%s0 + $0x110] sm:$0xff]
    %v185 = vld [vmem:[%s0 + $0x118] sm:$0xff]
    %v186 = vld [vmem:[%s0 + $0x120] sm:$0xff]
    %v187 = vld [vmem:[%s0 + $0x128] sm:$0xff]
    %v188 = vld [vmem:[%s0 + $0x130] sm:$0xff]
    %v189 = vld [vmem:[%s0 + $0x138] sm:$0xff]
    %v190 = vld [vmem:[%s0 + $0x140] sm:$0xff]
    %v191 = vld [vmem:[%s0 + $0x148] sm:$0xff]
    %v192 = vld [vmem:[%s0 + $0x150] sm:$0xff]
    %v193 = vld [vmem:[%s0 + $0x158] sm:$0xff]
    %v194 = vld [vmem:[%s0 + $0x160] sm:$0xff]
    %v195 = vld [vmem:[%s0 + $0x168] sm:$0xff]
    %v196 = vld [vmem:[%s0 + $0x170] sm:$0xff]
    %v197 = vld [vmem:[%s0 + $0x178] sm:$0xff]
    %v198 = vld [vmem:[%s0 + $0x180] sm:$0xff]
    %v199 = vld [vmem:[%s0 + $0x188] sm:$0xff]
    %v200 = vld [vmem:[%s0 + $0x190] sm:$0xff]
    %v201 = vld [vmem:[%s0 + $0x198] sm:$0xff]
    %v202 = vld [vmem:[%s0 + $0x1a0] sm:$0xff]
    %v203 = vld [vmem:[%s0 + $0x1a8] sm:$0xff]
    %v204 = vld [vmem:[%s0 + $0x1b0] sm:$0xff]
    %v205 = vld [vmem:[%s0 + $0x1b8] sm:$0xff]
    %v206 = vld [vmem:[%s0 + $0x1c0] sm:$0xff]
    %v207 = vld [vmem:[%s0 + $0x1c8] sm:$0xff]
    %v208 = vld [vmem:[%s0 + $0x1d0] sm:$0xff]
    %v209 = vld [vmem:[%s0 + $0x1d8] sm:$0xff]
    %v210 = vld [vmem:[%s0 + $0x1e0] sm:$0xff]
    %v211 = vld [vmem:[%s0 + $0x1e8] sm:$0xff]
    %v212 = vld [vmem:[%s0 + $0x1f0] sm:$0xff]
    %v213 = vld [vmem:[%s0 + $0x1f8] sm:$0xff]
    %v214 = vld [vmem:[%s1] sm:$0xf]
    %v215 = vld [vmem:[%s1 + $0x4] sm:$0xf]
    %v216 = vld [vmem:[%s1 + $0x8] sm:$0xf]
    %v217 = vld [vmem:[%s1 + $0xc] sm:$0xf]
    %v218 = vld [vmem:[%s1 + $0x10] sm:$0xf]
    %v219 = vld [vmem:[%s1 + $0x14] sm:$0xf]
    %v220 = vld [vmem:[%s1 + $0x18] sm:$0xf]
    %v221 = vld [vmem:[%s1 + $0x1c] sm:$0xf]
    %v222 = vld [vmem:[%s1 + $0x20] sm:$0xf]
    %v223 = vld [vmem:[%s1 + $0x24] sm:$0xf]
    %v224 = vld [vmem:[%s1 + $0x28] sm:$0xf]
    %v225 = vld [vmem:[%s1 + $0x2c] sm:$0xf]
    %v226 = vld [vmem:[%s1 + $0x30] sm:$0xf]
    %v227 = vld [vmem:[%s1 + $0x34] sm:$0xf]
    %v228 = vld [vmem:[%s1 + $0x38] sm:$0xf]
    %v229 = vld [vmem:[%s1 + $0x3c] sm:$0xf]
    %v230 = vld [vmem:[%s1 + $0x40] sm:$0xf]
    %v231 = vld [vmem:[%s1 + $0x44] sm:$0xf]
    %v232 = vld [vmem:[%s1 + $0x48] sm:$0xf]
    %v233 = vld [vmem:[%s1 + $0x4c] sm:$0xf]
    %v234 = vld [vmem:[%s1 + $0x50] sm:$0xf]
    %v235 = vld [vmem:[%s1 + $0x54] sm:$0xf]
    %v236 = vld [vmem:[%s1 + $0x58] sm:$0xf]
    %v237 = vld [vmem:[%s1 + $0x5c] sm:$0xf]
    %v238 = vld [vmem:[%s1 + $0x60] sm:$0xf]
    %v239 = vld [vmem:[%s1 + $0x64] sm:$0xf]
    %v240 = vld [vmem:[%s1 + $0x68] sm:$0xf]
    %v241 = vld [vmem:[%s1 + $0x6c] sm:$0xf]
    %v242 = vld [vmem:[%s1 + $0x70] sm:$0xf]
    %v243 = vld [vmem:[%s1 + $0x74] sm:$0xf]
    %v244 = vld [vmem:[%s1 + $0x78] sm:$0xf]
    %v245 = vld [vmem:[%s1 + $0x7c] sm:$0xf]
    %v310 = vunpack.c.l.b16 %v150
    %v311 = vunpack.c.h.b16 %v150
    %v312 = vunpack.c.l.b16 %v151
    %v313 = vunpack.c.h.b16 %v151
    %v314 = vunpack.c.l.b16 %v152
    %v315 = vunpack.c.h.b16 %v152
    %v316 = vunpack.c.l.b16 %v153
    %v317 = vunpack.c.h.b16 %v153
    %v318 = vunpack.c.l.b16 %v154
    %v319 = vunpack.c.h.b16 %v154
    %v320 = vunpack.c.l.b16 %v155
    %v321 = vunpack.c.h.b16 %v155
    %v322 = vunpack.c.l.b16 %v156
    %v323 = vunpack.c.h.b16 %v156
    %v324 = vunpack.c.l.b16 %v157
    %v325 = vunpack.c.h.b16 %v157
    %v326 = vunpack.c.l.b16 %v158
    %v327 = vunpack.c.h.b16 %v158
    %v328 = vunpack.c.l.b16 %v159
    %v329 = vunpack.c.h.b16 %v159
    %v330 = vunpack.c.l.b16 %v160
    %v331 = vunpack.c.h.b16 %v160
    %v332 = vunpack.c.l.b16 %v161
    %v333 = vunpack.c.h.b16 %v161
    %v334 = vunpack.c.l.b16 %v162
    %v335 = vunpack.c.h.b16 %v162
    %v336 = vunpack.c.l.b16 %v163
    %v337 = vunpack.c.h.b16 %v163
    %v338 = vunpack.c.l.b16 %v164
    %v339 = vunpack.c.h.b16 %v164
    %v340 = vunpack.c.l.b16 %v165
    %v341 = vunpack.c.h.b16 %v165
    %v342 = vunpack.c.l.b16 %v166
    %v343 = vunpack.c.h.b16 %v166
    %v344 = vunpack.c.l.b16 %v167
    %v345 = vunpack.c.h.b16 %v167
    %v346 = vunpack.c.l.b16 %v168
    %v347 = vunpack.c.h.b16 %v168
    %v348 = vunpack.c.l.b16 %v169
    %v349 = vunpack.c.h.b16 %v169
    %v350 = vunpack.c.l.b16 %v170
    %v351 = vunpack.c.h.b16 %v170
    %v352 = vunpack.c.l.b16 %v171
    %v353 = vunpack.c.h.b16 %v171
    %v354 = vunpack.c.l.b16 %v172
    %v355 = vunpack.c.h.b16 %v172
    %v356 = vunpack.c.l.b16 %v173
    %v357 = vunpack.c.h.b16 %v173
    %v358 = vunpack.c.l.b16 %v174
    %v359 = vunpack.c.h.b16 %v174
    %v360 = vunpack.c.l.b16 %v175
    %v361 = vunpack.c.h.b16 %v175
    %v362 = vunpack.c.l.b16 %v176
    %v363 = vunpack.c.h.b16 %v176
    %v364 = vunpack.c.l.b16 %v177
    %v365 = vunpack.c.h.b16 %v177
    %v366 = vunpack.c.l.b16 %v178
    %v367 = vunpack.c.h.b16 %v178
    %v368 = vunpack.c.l.b16 %v179
    %v369 = vunpack.c.h.b16 %v179
    %v370 = vunpack.c.l.b16 %v180
    %v371 = vunpack.c.h.b16 %v180
    %v372 = vunpack.c.l.b16 %v181
    %v373 = vunpack.c.h.b16 %v181
    %v374 = vunpack.c.l.b16 %v182
    %v375 = vunpack.c.h.b16 %v182
    %v376 = vunpack.c.l.b16 %v183
    %v377 = vunpack.c.h.b16 %v183
    %v378 = vunpack.c.l.b16 %v184
    %v379 = vunpack.c.h.b16 %v184
    %v380 = vunpack.c.l.b16 %v185
    %v381 = vunpack.c.h.b16 %v185
    %v382 = vunpack.c.l.b16 %v186
    %v383 = vunpack.c.h.b16 %v186
    %v384 = vunpack.c.l.b16 %v187
    %v385 = vunpack.c.h.b16 %v187
    %v386 = vunpack.c.l.b16 %v188
    %v387 = vunpack.c.h.b16 %v188
    %v388 = vunpack.c.l.b16 %v189
    %v389 = vunpack.c.h.b16 %v189
    %v390 = vunpack.c.l.b16 %v190
    %v391 = vunpack.c.h.b16 %v190
    %v392 = vunpack.c.l.b16 %v191
    %v393 = vunpack.c.h.b16 %v191
    %v394 = vunpack.c.l.b16 %v192
    %v395 = vunpack.c.h.b16 %v192
    %v396 = vunpack.c.l.b16 %v193
    %v397 = vunpack.c.h.b16 %v193
    %v398 = vunpack.c.l.b16 %v194
    %v399 = vunpack.c.h.b16 %v194
    %v400 = vunpack.c.l.b16 %v195
    %v401 = vunpack.c.h.b16 %v195
    %v402 = vunpack.c.l.b16 %v196
    %v403 = vunpack.c.h.b16 %v196
    %v404 = vunpack.c.l.b16 %v197
    %v405 = vunpack.c.h.b16 %v197
    %v406 = vunpack.c.l.b16 %v198
    %v407 = vunpack.c.h.b16 %v198
    %v408 = vunpack.c.l.b16 %v199
    %v409 = vunpack.c.h.b16 %v199
    %v410 = vunpack.c.l.b16 %v200
    %v411 = vunpack.c.h.b16 %v200
    %v412 = vunpack.c.l.b16 %v201
    %v413 = vunpack.c.h.b16 %v201
    %v414 = vunpack.c.l.b16 %v202
    %v415 = vunpack.c.h.b16 %v202
    %v416 = vunpack.c.l.b16 %v203
    %v417 = vunpack.c.h.b16 %v203
    %v418 = vunpack.c.l.b16 %v204
    %v419 = vunpack.c.h.b16 %v204
    %v420 = vunpack.c.l.b16 %v205
    %v421 = vunpack.c.h.b16 %v205
    %v422 = vunpack.c.l.b16 %v206
    %v423 = vunpack.c.h.b16 %v206
    %v424 = vunpack.c.l.b16 %v207
    %v425 = vunpack.c.h.b16 %v207
    %v426 = vunpack.c.l.b16 %v208
    %v427 = vunpack.c.h.b16 %v208
    %v428 = vunpack.c.l.b16 %v209
    %v429 = vunpack.c.h.b16 %v209
    %v430 = vunpack.c.l.b16 %v210
    %v431 = vunpack.c.h.b16 %v210
    %v432 = vunpack.c.l.b16 %v211
    %v433 = vunpack.c.h.b16 %v211
    %v434 = vunpack.c.l.b16 %v212
    %v435 = vunpack.c.h.b16 %v212
    %v436 = vunpack.c.l.b16 %v213
    %v437 = vunpack.c.h.b16 %v213
    %v438 = vpack.c.b16 %v312, %v310
    %v439 = vpack.c.b16 %v313, %v311
    %v440 = vpack.c.b16 %v316, %v314
    %v441 = vpack.c.b16 %v317, %v315
    %v442 = vpack.c.b16 %v320, %v318
    %v443 = vpack.c.b16 %v321, %v319
    %v444 = vpack.c.b16 %v324, %v322
    %v445 = vpack.c.b16 %v325, %v323
    %v446 = vpack.c.b16 %v328, %v326
    %v447 = vpack.c.b16 %v329, %v327
    %v448 = vpack.c.b16 %v332, %v330
    %v449 = vpack.c.b16 %v333, %v331
    %v450 = vpack.c.b16 %v336, %v334
    %v451 = vpack.c.b16 %v337, %v335
    %v452 = vpack.c.b16 %v340, %v338
    %v453 = vpack.c.b16 %v341, %v339
    %v454 = vpack.c.b16 %v344, %v342
    %v455 = vpack.c.b16 %v345, %v343
    %v456 = vpack.c.b16 %v348, %v346
    %v457 = vpack.c.b16 %v349, %v347
    %v458 = vpack.c.b16 %v352, %v350
    %v459 = vpack.c.b16 %v353, %v351
    %v460 = vpack.c.b16 %v356, %v354
    %v461 = vpack.c.b16 %v357, %v355
    %v462 = vpack.c.b16 %v360, %v358
    %v463 = vpack.c.b16 %v361, %v359
    %v464 = vpack.c.b16 %v364, %v362
    %v465 = vpack.c.b16 %v365, %v363
    %v466 = vpack.c.b16 %v368, %v366
    %v467 = vpack.c.b16 %v369, %v367
    %v468 = vpack.c.b16 %v372, %v370
    %v469 = vpack.c.b16 %v373, %v371
    %v470 = vpack.c.b16 %v376, %v374
    %v471 = vpack.c.b16 %v377, %v375
    %v472 = vpack.c.b16 %v380, %v378
    %v473 = vpack.c.b16 %v381, %v379
    %v474 = vpack.c.b16 %v384, %v382
    %v475 = vpack.c.b16 %v385, %v383
    %v476 = vpack.c.b16 %v388, %v386
    %v477 = vpack.c.b16 %v389, %v387
    %v478 = vpack.c.b16 %v392, %v390
    %v479 = vpack.c.b16 %v393, %v391
    %v480 = vpack.c.b16 %v396, %v394
    %v481 = vpack.c.b16 %v397, %v395
    %v482 = vpack.c.b16 %v400, %v398
    %v483 = vpack.c.b16 %v401, %v399
    %v484 = vpack.c.b16 %v404, %v402
    %v485 = vpack.c.b16 %v405, %v403
    %v486 = vpack.c.b16 %v408, %v406
    %v487 = vpack.c.b16 %v409, %v407
    %v488 = vpack.c.b16 %v412, %v410
    %v489 = vpack.c.b16 %v413, %v411
    %v490 = vpack.c.b16 %v416, %v414
    %v491 = vpack.c.b16 %v417, %v415
    %v492 = vpack.c.b16 %v420, %v418
    %v493 = vpack.c.b16 %v421, %v419
    %v494 = vpack.c.b16 %v424, %v422
    %v495 = vpack.c.b16 %v425, %v423
    %v496 = vpack.c.b16 %v428, %v426
    %v497 = vpack.c.b16 %v429, %v427
    %v498 = vpack.c.b16 %v432, %v430
    %v499 = vpack.c.b16 %v433, %v431
    %v500 = vpack.c.b16 %v436, %v434
    %v501 = vpack.c.b16 %v437, %v435
    %v598 = vunpack.c.l.b16 %v214
    %v599 = vunpack.c.l.b16 %v215
    %v600 = vunpack.c.l.b16 %v216
    %v601 = vunpack.c.l.b16 %v217
    %v602 = vunpack.c.l.b16 %v218
    %v603 = vunpack.c.l.b16 %v219
    %v604 = vunpack.c.l.b16 %v220
    %v605 = vunpack.c.l.b16 %v221
    %v606 = vunpack.c.l.b16 %v222
    %v607 = vunpack.c.l.b16 %v223
    %v608 = vunpack.c.l.b16 %v224
    %v609 = vunpack.c.l.b16 %v225
    %v610 = vunpack.c.l.b16 %v226
    %v611 = vunpack.c.l.b16 %v227
    %v612 = vunpack.c.l.b16 %v228
    %v613 = vunpack.c.l.b16 %v229
    %v614 = vunpack.c.l.b16 %v230
    %v615 = vunpack.c.l.b16 %v231
    %v616 = vunpack.c.l.b16 %v232
    %v617 = vunpack.c.l.b16 %v233
    %v618 = vunpack.c.l.b16 %v234
    %v619 = vunpack.c.l.b16 %v235
    %v620 = vunpack.c.l.b16 %v236
    %v621 = vunpack.c.l.b16 %v237
    %v622 = vunpack.c.l.b16 %v238
    %v623 = vunpack.c.l.b16 %v239
    %v624 = vunpack.c.l.b16 %v240
    %v625 = vunpack.c.l.b16 %v241
    %v626 = vunpack.c.l.b16 %v242
    %v627 = vunpack.c.l.b16 %v243
    %v628 = vunpack.c.l.b16 %v244
    %v629 = vunpack.c.l.b16 %v245
    %v630 = vpack.c.b16 %v599, %v598
    %v631 = vpack.c.b16 %v601, %v600
    %v632 = vpack.c.b16 %v603, %v602
    %v633 = vpack.c.b16 %v605, %v604
    %v634 = vpack.c.b16 %v607, %v606
    %v635 = vpack.c.b16 %v609, %v608
    %v636 = vpack.c.b16 %v611, %v610
    %v637 = vpack.c.b16 %v613, %v612
    %v638 = vpack.c.b16 %v615, %v614
    %v639 = vpack.c.b16 %v617, %v616
    %v640 = vpack.c.b16 %v619, %v618
    %v641 = vpack.c.b16 %v621, %v620
    %v642 = vpack.c.b16 %v623, %v622
    %v643 = vpack.c.b16 %v625, %v624
    %v644 = vpack.c.b16 %v627, %v626
    %v645 = vpack.c.b16 %v629, %v628
    %662 = vmatpush.bf16.msra.mxu0 %v637
    %663 = vmatpush.bf16.msra.mxu0 %v636
    %664 = vmatpush.bf16.msra.mxu0 %v635
    %665 = vmatpush.bf16.msra.mxu0 %v634
    %666 = vmatpush.bf16.msra.mxu0 %v633
    %667 = vmatpush.bf16.msra.mxu0 %v632
    %668 = vmatpush.bf16.msra.mxu0 %v631
    %669 = vmatpush.bf16.msra.mxu0 %v630
    %670 = vmatmul.bf16.gmra.mxu0 %v438
    %v671 = vpop.f32.mrf.mxu0
    %v672 = vadd.f32 0.0, %v671
    %v673 = vpop.f32.mrf.mxu0
    %v674 = vadd.f32 0.0, %v673
    %675 = vmatmul.bf16.gmra.mxu0 %v440
    %v676 = vpop.f32.mrf.mxu0
    %v677 = vadd.f32 0.0, %v676
    %v678 = vpop.f32.mrf.mxu0
    %v679 = vadd.f32 0.0, %v678
    %680 = vmatmul.bf16.gmra.mxu0 %v442
    %v681 = vpop.f32.mrf.mxu0
    %v682 = vadd.f32 0.0, %v681
    %v683 = vpop.f32.mrf.mxu0
    %v684 = vadd.f32 0.0, %v683
    %685 = vmatmul.bf16.gmra.mxu0 %v444
    %v686 = vpop.f32.mrf.mxu0
    %v687 = vadd.f32 0.0, %v686
    %v688 = vpop.f32.mrf.mxu0
    %v689 = vadd.f32 0.0, %v688
    %690 = vmatmul.bf16.gmra.mxu0 %v446
    %v691 = vpop.f32.mrf.mxu0
    %v692 = vadd.f32 0.0, %v691
    %v693 = vpop.f32.mrf.mxu0
    %v694 = vadd.f32 0.0, %v693
    %695 = vmatmul.bf16.gmra.mxu0 %v448
    %v696 = vpop.f32.mrf.mxu0
    %v697 = vadd.f32 0.0, %v696
    %v698 = vpop.f32.mrf.mxu0
    %v699 = vadd.f32 0.0, %v698
    %700 = vmatmul.bf16.gmra.mxu0 %v450
    %v701 = vpop.f32.mrf.mxu0
    %v702 = vadd.f32 0.0, %v701
    %v703 = vpop.f32.mrf.mxu0
    %v704 = vadd.f32 0.0, %v703
    %705 = vmatmul.bf16.gmra.mxu0 %v452
    %v706 = vpop.f32.mrf.mxu0
    %v707 = vadd.f32 0.0, %v706
    %v708 = vpop.f32.mrf.mxu0
    %v709 = vadd.f32 0.0, %v708
    %710 = vmatmul.bf16.gmra.mxu0 %v454
    %v711 = vpop.f32.mrf.mxu0
    %v712 = vadd.f32 0.0, %v711
    %v713 = vpop.f32.mrf.mxu0
    %v714 = vadd.f32 0.0, %v713
    %715 = vmatmul.bf16.gmra.mxu0 %v456
    %v716 = vpop.f32.mrf.mxu0
    %v717 = vadd.f32 0.0, %v716
    %v718 = vpop.f32.mrf.mxu0
    %v719 = vadd.f32 0.0, %v718
    %720 = vmatmul.bf16.gmra.mxu0 %v458
    %v721 = vpop.f32.mrf.mxu0
    %v722 = vadd.f32 0.0, %v721
    %v723 = vpop.f32.mrf.mxu0
    %v724 = vadd.f32 0.0, %v723
    %725 = vmatmul.bf16.gmra.mxu0 %v460
    %v726 = vpop.f32.mrf.mxu0
    %v727 = vadd.f32 0.0, %v726
    %v728 = vpop.f32.mrf.mxu0
    %v729 = vadd.f32 0.0, %v728
    %730 = vmatmul.bf16.gmra.mxu0 %v462
    %v731 = vpop.f32.mrf.mxu0
    %v732 = vadd.f32 0.0, %v731
    %v733 = vpop.f32.mrf.mxu0
    %v734 = vadd.f32 0.0, %v733
    %735 = vmatmul.bf16.gmra.mxu0 %v464
    %v736 = vpop.f32.mrf.mxu0
    %v737 = vadd.f32 0.0, %v736
    %v738 = vpop.f32.mrf.mxu0
    %v739 = vadd.f32 0.0, %v738
    %740 = vmatmul.bf16.gmra.mxu0 %v466
    %v741 = vpop.f32.mrf.mxu0
    %v742 = vadd.f32 0.0, %v741
    %v743 = vpop.f32.mrf.mxu0
    %v744 = vadd.f32 0.0, %v743
    %745 = vmatmul.bf16.gmra.mxu0 %v468
    %v746 = vpop.f32.mrf.mxu0
    %v747 = vadd.f32 0.0, %v746
    %v748 = vpop.f32.mrf.mxu0
    %v749 = vadd.f32 0.0, %v748
    %750 = vmatmul.bf16.gmra.mxu0 %v470
    %v751 = vpop.f32.mrf.mxu0
    %v752 = vadd.f32 0.0, %v751
    %v753 = vpop.f32.mrf.mxu0
    %v754 = vadd.f32 0.0, %v753
    %755 = vmatmul.bf16.gmra.mxu0 %v472
    %v756 = vpop.f32.mrf.mxu0
    %v757 = vadd.f32 0.0, %v756
    %v758 = vpop.f32.mrf.mxu0
    %v759 = vadd.f32 0.0, %v758
    %760 = vmatmul.bf16.gmra.mxu0 %v474
    %v761 = vpop.f32.mrf.mxu0
    %v762 = vadd.f32 0.0, %v761
    %v763 = vpop.f32.mrf.mxu0
    %v764 = vadd.f32 0.0, %v763
    %765 = vmatmul.bf16.gmra.mxu0 %v476
    %v766 = vpop.f32.mrf.mxu0
    %v767 = vadd.f32 0.0, %v766
    %v768 = vpop.f32.mrf.mxu0
    %v769 = vadd.f32 0.0, %v768
    %770 = vmatmul.bf16.gmra.mxu0 %v478
    %v771 = vpop.f32.mrf.mxu0
    %v772 = vadd.f32 0.0, %v771
    %v773 = vpop.f32.mrf.mxu0
    %v774 = vadd.f32 0.0, %v773
    %775 = vmatmul.bf16.gmra.mxu0 %v480
    %v776 = vpop.f32.mrf.mxu0
    %v777 = vadd.f32 0.0, %v776
    %v778 = vpop.f32.mrf.mxu0
    %v779 = vadd.f32 0.0, %v778
    %780 = vmatmul.bf16.gmra.mxu0 %v482
    %v781 = vpop.f32.mrf.mxu0
    %v782 = vadd.f32 0.0, %v781
    %v783 = vpop.f32.mrf.mxu0
    %v784 = vadd.f32 0.0, %v783
    %785 = vmatmul.bf16.gmra.mxu0 %v484
    %v786 = vpop.f32.mrf.mxu0
    %v787 = vadd.f32 0.0, %v786
    %v788 = vpop.f32.mrf.mxu0
    %v789 = vadd.f32 0.0, %v788
    %790 = vmatmul.bf16.gmra.mxu0 %v486
    %v791 = vpop.f32.mrf.mxu0
    %v792 = vadd.f32 0.0, %v791
    %v793 = vpop.f32.mrf.mxu0
    %v794 = vadd.f32 0.0, %v793
    %795 = vmatmul.bf16.gmra.mxu0 %v488
    %v796 = vpop.f32.mrf.mxu0
    %v797 = vadd.f32 0.0, %v796
    %v798 = vpop.f32.mrf.mxu0
    %v799 = vadd.f32 0.0, %v798
    %800 = vmatmul.bf16.gmra.mxu0 %v490
    %v801 = vpop.f32.mrf.mxu0
    %v802 = vadd.f32 0.0, %v801
    %v803 = vpop.f32.mrf.mxu0
    %v804 = vadd.f32 0.0, %v803
    %805 = vmatmul.bf16.gmra.mxu0 %v492
    %v806 = vpop.f32.mrf.mxu0
    %v807 = vadd.f32 0.0, %v806
    %v808 = vpop.f32.mrf.mxu0
    %v809 = vadd.f32 0.0, %v808
    %810 = vmatmul.bf16.gmra.mxu0 %v494
    %v811 = vpop.f32.mrf.mxu0
    %v812 = vadd.f32 0.0, %v811
    %v813 = vpop.f32.mrf.mxu0
    %v814 = vadd.f32 0.0, %v813
    %815 = vmatmul.bf16.gmra.mxu0 %v496
    %v816 = vpop.f32.mrf.mxu0
    %v817 = vadd.f32 0.0, %v816
    %v818 = vpop.f32.mrf.mxu0
    %v819 = vadd.f32 0.0, %v818
    %820 = vmatmul.bf16.gmra.mxu0 %v498
    %v821 = vpop.f32.mrf.mxu0
    %v822 = vadd.f32 0.0, %v821
    %v823 = vpop.f32.mrf.mxu0
    %v824 = vadd.f32 0.0, %v823
    %825 = vmatmul.bf16.gmra.mxu0 %v500
    %v826 = vpop.f32.mrf.mxu0
    %v827 = vadd.f32 0.0, %v826
    %v828 = vpop.f32.mrf.mxu0
    %v829 = vadd.f32 0.0, %v828
    %830 = vdwg.mxu0
    %831 = vmatpush.bf16.msra.mxu0 %v645
    %832 = vmatpush.bf16.msra.mxu0 %v644
    %833 = vmatpush.bf16.msra.mxu0 %v643
    %834 = vmatpush.bf16.msra.mxu0 %v642
    %835 = vmatpush.bf16.msra.mxu0 %v641
    %836 = vmatpush.bf16.msra.mxu0 %v640
    %837 = vmatpush.bf16.msra.mxu0 %v639
    %838 = vmatpush.bf16.msra.mxu0 %v638
    %839 = vmatmul.bf16.gmra.mxu0 %v439
    %v840 = vpop.f32.mrf.mxu0
    %v841 = vadd.f32 %v672, %v840
    %v842 = vpop.f32.mrf.mxu0
    %v843 = vadd.f32 %v674, %v842
    %844 = vmatmul.bf16.gmra.mxu0 %v441
    %v845 = vpop.f32.mrf.mxu0
    %v846 = vadd.f32 %v677, %v845
    %v847 = vpop.f32.mrf.mxu0
    %v848 = vadd.f32 %v679, %v847
    %849 = vmatmul.bf16.gmra.mxu0 %v443
    %v850 = vpop.f32.mrf.mxu0
    %v851 = vadd.f32 %v682, %v850
    %v852 = vpop.f32.mrf.mxu0
    %v853 = vadd.f32 %v684, %v852
    %854 = vmatmul.bf16.gmra.mxu0 %v445
    %v855 = vpop.f32.mrf.mxu0
    %v856 = vadd.f32 %v687, %v855
    %v857 = vpop.f32.mrf.mxu0
    %v858 = vadd.f32 %v689, %v857
    %859 = vmatmul.bf16.gmra.mxu0 %v447
    %v860 = vpop.f32.mrf.mxu0
    %v861 = vadd.f32 %v692, %v860
    %v862 = vpop.f32.mrf.mxu0
    %v863 = vadd.f32 %v694, %v862
    %864 = vmatmul.bf16.gmra.mxu0 %v449
    %v865 = vpop.f32.mrf.mxu0
    %v866 = vadd.f32 %v697, %v865
    %v867 = vpop.f32.mrf.mxu0
    %v868 = vadd.f32 %v699, %v867
    %869 = vmatmul.bf16.gmra.mxu0 %v451
    %v870 = vpop.f32.mrf.mxu0
    %v871 = vadd.f32 %v702, %v870
    %v872 = vpop.f32.mrf.mxu0
    %v873 = vadd.f32 %v704, %v872
    %874 = vmatmul.bf16.gmra.mxu0 %v453
    %v875 = vpop.f32.mrf.mxu0
    %v876 = vadd.f32 %v707, %v875
    %v877 = vpop.f32.mrf.mxu0
    %v878 = vadd.f32 %v709, %v877
    %879 = vmatmul.bf16.gmra.mxu0 %v455
    %v880 = vpop.f32.mrf.mxu0
    %v881 = vadd.f32 %v712, %v880
    %v882 = vpop.f32.mrf.mxu0
    %v883 = vadd.f32 %v714, %v882
    %884 = vmatmul.bf16.gmra.mxu0 %v457
    %v885 = vpop.f32.mrf.mxu0
    %v886 = vadd.f32 %v717, %v885
    %v887 = vpop.f32.mrf.mxu0
    %v888 = vadd.f32 %v719, %v887
    %889 = vmatmul.bf16.gmra.mxu0 %v459
    %v890 = vpop.f32.mrf.mxu0
    %v891 = vadd.f32 %v722, %v890
    %v892 = vpop.f32.mrf.mxu0
    %v893 = vadd.f32 %v724, %v892
    %894 = vmatmul.bf16.gmra.mxu0 %v461
    %v895 = vpop.f32.mrf.mxu0
    %v896 = vadd.f32 %v727, %v895
    %v897 = vpop.f32.mrf.mxu0
    %v898 = vadd.f32 %v729, %v897
    %899 = vmatmul.bf16.gmra.mxu0 %v463
    %v900 = vpop.f32.mrf.mxu0
    %v901 = vadd.f32 %v732, %v900
    %v902 = vpop.f32.mrf.mxu0
    %v903 = vadd.f32 %v734, %v902
    %904 = vmatmul.bf16.gmra.mxu0 %v465
    %v905 = vpop.f32.mrf.mxu0
    %v906 = vadd.f32 %v737, %v905
    %v907 = vpop.f32.mrf.mxu0
    %v908 = vadd.f32 %v739, %v907
    %909 = vmatmul.bf16.gmra.mxu0 %v467
    %v910 = vpop.f32.mrf.mxu0
    %v911 = vadd.f32 %v742, %v910
    %v912 = vpop.f32.mrf.mxu0
    %v913 = vadd.f32 %v744, %v912
    %914 = vmatmul.bf16.gmra.mxu0 %v469
    %v915 = vpop.f32.mrf.mxu0
    %v916 = vadd.f32 %v747, %v915
    %v917 = vpop.f32.mrf.mxu0
    %v918 = vadd.f32 %v749, %v917
    %919 = vmatmul.bf16.gmra.mxu0 %v471
    %v920 = vpop.f32.mrf.mxu0
    %v921 = vadd.f32 %v752, %v920
    %v922 = vpop.f32.mrf.mxu0
    %v923 = vadd.f32 %v754, %v922
    %924 = vmatmul.bf16.gmra.mxu0 %v473
    %v925 = vpop.f32.mrf.mxu0
    %v926 = vadd.f32 %v757, %v925
    %v927 = vpop.f32.mrf.mxu0
    %v928 = vadd.f32 %v759, %v927
    %929 = vmatmul.bf16.gmra.mxu0 %v475
    %v930 = vpop.f32.mrf.mxu0
    %v931 = vadd.f32 %v762, %v930
    %v932 = vpop.f32.mrf.mxu0
    %v933 = vadd.f32 %v764, %v932
    %934 = vmatmul.bf16.gmra.mxu0 %v477
    %v935 = vpop.f32.mrf.mxu0
    %v936 = vadd.f32 %v767, %v935
    %v937 = vpop.f32.mrf.mxu0
    %v938 = vadd.f32 %v769, %v937
    %939 = vmatmul.bf16.gmra.mxu0 %v479
    %v940 = vpop.f32.mrf.mxu0
    %v941 = vadd.f32 %v772, %v940
    %v942 = vpop.f32.mrf.mxu0
    %v943 = vadd.f32 %v774, %v942
    %944 = vmatmul.bf16.gmra.mxu0 %v481
    %v945 = vpop.f32.mrf.mxu0
    %v946 = vadd.f32 %v777, %v945
    %v947 = vpop.f32.mrf.mxu0
    %v948 = vadd.f32 %v779, %v947
    %949 = vmatmul.bf16.gmra.mxu0 %v483
    %v950 = vpop.f32.mrf.mxu0
    %v951 = vadd.f32 %v782, %v950
    %v952 = vpop.f32.mrf.mxu0
    %v953 = vadd.f32 %v784, %v952
    %954 = vmatmul.bf16.gmra.mxu0 %v485
    %v955 = vpop.f32.mrf.mxu0
    %v956 = vadd.f32 %v787, %v955
    %v957 = vpop.f32.mrf.mxu0
    %v958 = vadd.f32 %v789, %v957
    %959 = vmatmul.bf16.gmra.mxu0 %v487
    %v960 = vpop.f32.mrf.mxu0
    %v961 = vadd.f32 %v792, %v960
    %v962 = vpop.f32.mrf.mxu0
    %v963 = vadd.f32 %v794, %v962
    %964 = vmatmul.bf16.gmra.mxu0 %v489
    %v965 = vpop.f32.mrf.mxu0
    %v966 = vadd.f32 %v797, %v965
    %v967 = vpop.f32.mrf.mxu0
    %v968 = vadd.f32 %v799, %v967
    %969 = vmatmul.bf16.gmra.mxu0 %v491
    %v970 = vpop.f32.mrf.mxu0
    %v971 = vadd.f32 %v802, %v970
    %v972 = vpop.f32.mrf.mxu0
    %v973 = vadd.f32 %v804, %v972
    %974 = vmatmul.bf16.gmra.mxu0 %v493
    %v975 = vpop.f32.mrf.mxu0
    %v976 = vadd.f32 %v807, %v975
    %v977 = vpop.f32.mrf.mxu0
    %v978 = vadd.f32 %v809, %v977
    %979 = vmatmul.bf16.gmra.mxu0 %v495
    %v980 = vpop.f32.mrf.mxu0
    %v981 = vadd.f32 %v812, %v980
    %v982 = vpop.f32.mrf.mxu0
    %v983 = vadd.f32 %v814, %v982
    %984 = vmatmul.bf16.gmra.mxu0 %v497
    %v985 = vpop.f32.mrf.mxu0
    %v986 = vadd.f32 %v817, %v985
    %v987 = vpop.f32.mrf.mxu0
    %v988 = vadd.f32 %v819, %v987
    %989 = vmatmul.bf16.gmra.mxu0 %v499
    %v990 = vpop.f32.mrf.mxu0
    %v991 = vadd.f32 %v822, %v990
    %v992 = vpop.f32.mrf.mxu0
    %v993 = vadd.f32 %v824, %v992
    %994 = vmatmul.bf16.gmra.mxu0 %v501
    %v995 = vpop.f32.mrf.mxu0
    %v996 = vadd.f32 %v827, %v995
    %v997 = vpop.f32.mrf.mxu0
    %v998 = vadd.f32 %v829, %v997
    %999 = vdwg.mxu0
    %v1000 = vadd.f32 %v86, %v841
    %v1001 = vadd.f32 %v87, %v843
    %v1002 = vadd.f32 %v88, %v846
    %v1003 = vadd.f32 %v89, %v848
    %v1004 = vadd.f32 %v90, %v851
    %v1005 = vadd.f32 %v91, %v853
    %v1006 = vadd.f32 %v92, %v856
    %v1007 = vadd.f32 %v93, %v858
    %v1008 = vadd.f32 %v94, %v861
    %v1009 = vadd.f32 %v95, %v863
    %v1010 = vadd.f32 %v96, %v866
    %v1011 = vadd.f32 %v97, %v868
    %v1012 = vadd.f32 %v98, %v871
    %v1013 = vadd.f32 %v99, %v873
    %v1014 = vadd.f32 %v100, %v876
    %v1015 = vadd.f32 %v101, %v878
    %v1016 = vadd.f32 %v102, %v881
    %v1017 = vadd.f32 %v103, %v883
    %v1018 = vadd.f32 %v104, %v886
    %v1019 = vadd.f32 %v105, %v888
    %v1020 = vadd.f32 %v106, %v891
    %v1021 = vadd.f32 %v107, %v893
    %v1022 = vadd.f32 %v108, %v896
    %v1023 = vadd.f32 %v109, %v898
    %v1024 = vadd.f32 %v110, %v901
    %v1025 = vadd.f32 %v111, %v903
    %v1026 = vadd.f32 %v112, %v906
    %v1027 = vadd.f32 %v113, %v908
    %v1028 = vadd.f32 %v114, %v911
    %v1029 = vadd.f32 %v115, %v913
    %v1030 = vadd.f32 %v116, %v916
    %v1031 = vadd.f32 %v117, %v918
    %v1032 = vadd.f32 %v118, %v921
    %v1033 = vadd.f32 %v119, %v923
    %v1034 = vadd.f32 %v120, %v926
    %v1035 = vadd.f32 %v121, %v928
    %v1036 = vadd.f32 %v122, %v931
    %v1037 = vadd.f32 %v123, %v933
    %v1038 = vadd.f32 %v124, %v936
    %v1039 = vadd.f32 %v125, %v938
    %v1040 = vadd.f32 %v126, %v941
    %v1041 = vadd.f32 %v127, %v943
    %v1042 = vadd.f32 %v128, %v946
    %v1043 = vadd.f32 %v129, %v948
    %v1044 = vadd.f32 %v130, %v951
    %v1045 = vadd.f32 %v131, %v953
    %v1046 = vadd.f32 %v132, %v956
    %v1047 = vadd.f32 %v133, %v958
    %v1048 = vadd.f32 %v134, %v961
    %v1049 = vadd.f32 %v135, %v963
    %v1050 = vadd.f32 %v136, %v966
    %v1051 = vadd.f32 %v137, %v968
    %v1052 = vadd.f32 %v138, %v971
    %v1053 = vadd.f32 %v139, %v973
    %v1054 = vadd.f32 %v140, %v976
    %v1055 = vadd.f32 %v141, %v978
    %v1056 = vadd.f32 %v142, %v981
    %v1057 = vadd.f32 %v143, %v983
    %v1058 = vadd.f32 %v144, %v986
    %v1059 = vadd.f32 %v145, %v988
    %v1060 = vadd.f32 %v146, %v991
    %v1061 = vadd.f32 %v147, %v993
    %v1062 = vadd.f32 %v148, %v996
    %v1063 = vadd.f32 %v149, %v998
    %1064 = vst [vmem:[#allocation2] sm:$0xff] %v1000
    %1065 = vst [vmem:[#allocation2 + $0x8] sm:$0xff] %v1001
    %1066 = vst [vmem:[#allocation2 + $0x10] sm:$0xff] %v1002
    %1067 = vst [vmem:[#allocation2 + $0x18] sm:$0xff] %v1003
    %1068 = vst [vmem:[#allocation2 + $0x20] sm:$0xff] %v1004
    %1069 = vst [vmem:[#allocation2 + $0x28] sm:$0xff] %v1005
    %1070 = vst [vmem:[#allocation2 + $0x30] sm:$0xff] %v1006
    %1071 = vst [vmem:[#allocation2 + $0x38] sm:$0xff] %v1007
    %1072 = vst [vmem:[#allocation2 + $0x40] sm:$0xff] %v1008
    %1073 = vst [vmem:[#allocation2 + $0x48] sm:$0xff] %v1009
    %1074 = vst [vmem:[#allocation2 + $0x50] sm:$0xff] %v1010
    %1075 = vst [vmem:[#allocation2 + $0x58] sm:$0xff] %v1011
    %1076 = vst [vmem:[#allocation2 + $0x60] sm:$0xff] %v1012
    %1077 = vst [vmem:[#allocation2 + $0x68] sm:$0xff] %v1013
    %1078 = vst [vmem:[#allocation2 + $0x70] sm:$0xff] %v1014
    %1079 = vst [vmem:[#allocation2 + $0x78] sm:$0xff] %v1015
    %1080 = vst [vmem:[#allocation2 + $0x80] sm:$0xff] %v1016
    %1081 = vst [vmem:[#allocation2 + $0x88] sm:$0xff] %v1017
    %1082 = vst [vmem:[#allocation2 + $0x90] sm:$0xff] %v1018
    %1083 = vst [vmem:[#allocation2 + $0x98] sm:$0xff] %v1019
    %1084 = vst [vmem:[#allocation2 + $0xa0] sm:$0xff] %v1020
    %1085 = vst [vmem:[#allocation2 + $0xa8] sm:$0xff] %v1021
    %1086 = vst [vmem:[#allocation2 + $0xb0] sm:$0xff] %v1022
    %1087 = vst [vmem:[#allocation2 + $0xb8] sm:$0xff] %v1023
    %1088 = vst [vmem:[#allocation2 + $0xc0] sm:$0xff] %v1024
    %1089 = vst [vmem:[#allocation2 + $0xc8] sm:$0xff] %v1025
    %1090 = vst [vmem:[#allocation2 + $0xd0] sm:$0xff] %v1026
    %1091 = vst [vmem:[#allocation2 + $0xd8] sm:$0xff] %v1027
    %1092 = vst [vmem:[#allocation2 + $0xe0] sm:$0xff] %v1028
    %1093 = vst [vmem:[#allocation2 + $0xe8] sm:$0xff] %v1029
    %1094 = vst [vmem:[#allocation2 + $0xf0] sm:$0xff] %v1030
    %1095 = vst [vmem:[#allocation2 + $0xf8] sm:$0xff] %v1031
    %1096 = vst [vmem:[#allocation2 + $0x100] sm:$0xff] %v1032
    %1097 = vst [vmem:[#allocation2 + $0x108] sm:$0xff] %v1033
    %1098 = vst [vmem:[#allocation2 + $0x110] sm:$0xff] %v1034
    %1099 = vst [vmem:[#allocation2 + $0x118] sm:$0xff] %v1035
    %1100 = vst [vmem:[#allocation2 + $0x120] sm:$0xff] %v1036
    %1101 = vst [vmem:[#allocation2 + $0x128] sm:$0xff] %v1037
    %1102 = vst [vmem:[#allocation2 + $0x130] sm:$0xff] %v1038
    %1103 = vst [vmem:[#allocation2 + $0x138] sm:$0xff] %v1039
    %1104 = vst [vmem:[#allocation2 + $0x140] sm:$0xff] %v1040
    %1105 = vst [vmem:[#allocation2 + $0x148] sm:$0xff] %v1041
    %1106 = vst [vmem:[#allocation2 + $0x150] sm:$0xff] %v1042
    %1107 = vst [vmem:[#allocation2 + $0x158] sm:$0xff] %v1043
    %1108 = vst [vmem:[#allocation2 + $0x160] sm:$0xff] %v1044
    %1109 = vst [vmem:[#allocation2 + $0x168] sm:$0xff] %v1045
    %1110 = vst [vmem:[#allocation2 + $0x170] sm:$0xff] %v1046
    %1111 = vst [vmem:[#allocation2 + $0x178] sm:$0xff] %v1047
    %1112 = vst [vmem:[#allocation2 + $0x180] sm:$0xff] %v1048
    %1113 = vst [vmem:[#allocation2 + $0x188] sm:$0xff] %v1049
    %1114 = vst [vmem:[#allocation2 + $0x190] sm:$0xff] %v1050
    %1115 = vst [vmem:[#allocation2 + $0x198] sm:$0xff] %v1051
    %1116 = vst [vmem:[#allocation2 + $0x1a0] sm:$0xff] %v1052
    %1117 = vst [vmem:[#allocation2 + $0x1a8] sm:$0xff] %v1053
    %1118 = vst [vmem:[#allocation2 + $0x1b0] sm:$0xff] %v1054
    %1119 = vst [vmem:[#allocation2 + $0x1b8] sm:$0xff] %v1055
    %1120 = vst [vmem:[#allocation2 + $0x1c0] sm:$0xff] %v1056
    %1121 = vst [vmem:[#allocation2 + $0x1c8] sm:$0xff] %v1057
    %1122 = vst [vmem:[#allocation2 + $0x1d0] sm:$0xff] %v1058
    %1123 = vst [vmem:[#allocation2 + $0x1d8] sm:$0xff] %v1059
    %1124 = vst [vmem:[#allocation2 + $0x1e0] sm:$0xff] %v1060
    %1125 = vst [vmem:[#allocation2 + $0x1e8] sm:$0xff] %v1061
    %1126 = vst [vmem:[#allocation2 + $0x1f0] sm:$0xff] %v1062
    %1127 = vst [vmem:[#allocation2 + $0x1f8] sm:$0xff] %v1063
    // Predicated region
    $region22: #{conv_bn_act.1} parent=1 // pred_check
      %p1128 = pneg %p18
    $region23: #{conv_bn_act.1} parent=1 // pred_check_branch
      %1130 = sbr.rel (%p1128) target = $region25
    $region24: #{conv_bn_act.1} parent=1 // pred_region
      %v1131 = vld [vmem:[#allocation2] sm:$0xff]
      %v1132 = vld [vmem:[#allocation2 + $0x8] sm:$0xff]
      %v1133 = vld [vmem:[#allocation2 + $0x10] sm:$0xff]
      %v1134 = vld [vmem:[#allocation2 + $0x18] sm:$0xff]
      %v1135 = vld [vmem:[#allocation2 + $0x20] sm:$0xff]
      %v1136 = vld [vmem:[#allocation2 + $0x28] sm:$0xff]
      %v1137 = vld [vmem:[#allocation2 + $0x30] sm:$0xff]
      %v1138 = vld [vmem:[#allocation2 + $0x38] sm:$0xff]
      %v1139 = vld [vmem:[#allocation2 + $0x40] sm:$0xff]
      %v1140 = vld [vmem:[#allocation2 + $0x48] sm:$0xff]
      %v1141 = vld [vmem:[#allocation2 + $0x50] sm:$0xff]
      %v1142 = vld [vmem:[#allocation2 + $0x58] sm:$0xff]
      %v1143 = vld [vmem:[#allocation2 + $0x60] sm:$0xff]
      %v1144 = vld [vmem:[#allocation2 + $0x68] sm:$0xff]
      %v1145 = vld [vmem:[#allocation2 + $0x70] sm:$0xff]
      %v1146 = vld [vmem:[#allocation2 + $0x78] sm:$0xff]
      %v1147 = vld [vmem:[#allocation2 + $0x80] sm:$0xff]
      %v1148 = vld [vmem:[#allocation2 + $0x88] sm:$0xff]
      %v1149 = vld [vmem:[#allocation2 + $0x90] sm:$0xff]
      %v1150 = vld [vmem:[#allocation2 + $0x98] sm:$0xff]
      %v1151 = vld [vmem:[#allocation2 + $0xa0] sm:$0xff]
      %v1152 = vld [vmem:[#allocation2 + $0xa8] sm:$0xff]
      %v1153 = vld [vmem:[#allocation2 + $0xb0] sm:$0xff]
      %v1154 = vld [vmem:[#allocation2 + $0xb8] sm:$0xff]
      %v1155 = vld [vmem:[#allocation2 + $0xc0] sm:$0xff]
      %v1156 = vld [vmem:[#allocation2 + $0xc8] sm:$0xff]
      %v1157 = vld [vmem:[#allocation2 + $0xd0] sm:$0xff]
      %v1158 = vld [vmem:[#allocation2 + $0xd8] sm:$0xff]
      %v1159 = vld [vmem:[#allocation2 + $0xe0] sm:$0xff]
      %v1160 = vld [vmem:[#allocation2 + $0xe8] sm:$0xff]
      %v1161 = vld [vmem:[#allocation2 + $0xf0] sm:$0xff]
      %v1162 = vld [vmem:[#allocation2 + $0xf8] sm:$0xff]
      %v1163 = vld [vmem:[#allocation2 + $0x100] sm:$0xff]
      %v1164 = vld [vmem:[#allocation2 + $0x108] sm:$0xff]
      %v1165 = vld [vmem:[#allocation2 + $0x110] sm:$0xff]
      %v1166 = vld [vmem:[#allocation2 + $0x118] sm:$0xff]
      %v1167 = vld [vmem:[#allocation2 + $0x120] sm:$0xff]
      %v1168 = vld [vmem:[#allocation2 + $0x128] sm:$0xff]
      %v1169 = vld [vmem:[#allocation2 + $0x130] sm:$0xff]
      %v1170 = vld [vmem:[#allocation2 + $0x138] sm:$0xff]
      %v1171 = vld [vmem:[#allocation2 + $0x140] sm:$0xff]
      %v1172 = vld [vmem:[#allocation2 + $0x148] sm:$0xff]
      %v1173 = vld [vmem:[#allocation2 + $0x150] sm:$0xff]
      %v1174 = vld [vmem:[#allocation2 + $0x158] sm:$0xff]
      %v1175 = vld [vmem:[#allocation2 + $0x160] sm:$0xff]
      %v1176 = vld [vmem:[#allocation2 + $0x168] sm:$0xff]
      %v1177 = vld [vmem:[#allocation2 + $0x170] sm:$0xff]
      %v1178 = vld [vmem:[#allocation2 + $0x178] sm:$0xff]
      %v1179 = vld [vmem:[#allocation2 + $0x180] sm:$0xff]
      %v1180 = vld [vmem:[#allocation2 + $0x188] sm:$0xff]
      %v1181 = vld [vmem:[#allocation2 + $0x190] sm:$0xff]
      %v1182 = vld [vmem:[#allocation2 + $0x198] sm:$0xff]
      %v1183 = vld [vmem:[#allocation2 + $0x1a0] sm:$0xff]
      %v1184 = vld [vmem:[#allocation2 + $0x1a8] sm:$0xff]
      %v1185 = vld [vmem:[#allocation2 + $0x1b0] sm:$0xff]
      %v1186 = vld [vmem:[#allocation2 + $0x1b8] sm:$0xff]
      %v1187 = vld [vmem:[#allocation2 + $0x1c0] sm:$0xff]
      %v1188 = vld [vmem:[#allocation2 + $0x1c8] sm:$0xff]
      %v1189 = vld [vmem:[#allocation2 + $0x1d0] sm:$0xff]
      %v1190 = vld [vmem:[#allocation2 + $0x1d8] sm:$0xff]
      %v1191 = vld [vmem:[#allocation2 + $0x1e0] sm:$0xff]
      %v1192 = vld [vmem:[#allocation2 + $0x1e8] sm:$0xff]
      %v1193 = vld [vmem:[#allocation2 + $0x1f0] sm:$0xff]
      %v1194 = vld [vmem:[#allocation2 + $0x1f8] sm:$0xff]
      %v1195 = vld [vmem:[%s2] sm:$0x1]
      %v1196 = vld [vmem:[%s3] sm:$0x1]
      %v1197 = vadd.f32 %v1131, %v1132
      %v1198 = vadd.f32 %v1197, %v1133
      %v1199 = vadd.f32 %v1198, %v1134
      %v1200 = vadd.f32 %v1199, %v1135
      %v1201 = vadd.f32 %v1200, %v1136
      %v1202 = vadd.f32 %v1201, %v1137
      %v1203 = vadd.f32 %v1202, %v1138
      %v1204 = vadd.f32 %v1203, %v1139
      %v1205 = vadd.f32 %v1204, %v1140
      %v1206 = vadd.f32 %v1205, %v1141
      %v1207 = vadd.f32 %v1206, %v1142
      %v1208 = vadd.f32 %v1207, %v1143
      %v1209 = vadd.f32 %v1208, %v1144
      %v1210 = vadd.f32 %v1209, %v1145
      %v1211 = vadd.f32 %v1210, %v1146
      %v1212 = vadd.f32 %v1211, %v1147
      %v1213 = vadd.f32 %v1212, %v1148
      %v1214 = vadd.f32 %v1213, %v1149
      %v1215 = vadd.f32 %v1214, %v1150
      %v1216 = vadd.f32 %v1215, %v1151
      %v1217 = vadd.f32 %v1216, %v1152
      %v1218 = vadd.f32 %v1217, %v1153
      %v1219 = vadd.f32 %v1218, %v1154
      %v1220 = vadd.f32 %v1219, %v1155
      %v1221 = vadd.f32 %v1220, %v1156
      %v1222 = vadd.f32 %v1221, %v1157
      %v1223 = vadd.f32 %v1222, %v1158
      %v1224 = vadd.f32 %v1223, %v1159
      %v1225 = vadd.f32 %v1224, %v1160
      %v1226 = vadd.f32 %v1225, %v1161
      %v1227 = vadd.f32 %v1226, %v1162
      %v1228 = vadd.f32 %v1227, %v1163
      %v1229 = vadd.f32 %v1228, %v1164
      %v1230 = vadd.f32 %v1229, %v1165
      %v1231 = vadd.f32 %v1230, %v1166
      %v1232 = vadd.f32 %v1231, %v1167
      %v1233 = vadd.f32 %v1232, %v1168
      %v1234 = vadd.f32 %v1233, %v1169
      %v1235 = vadd.f32 %v1234, %v1170
      %v1236 = vadd.f32 %v1235, %v1171
      %v1237 = vadd.f32 %v1236, %v1172
      %v1238 = vadd.f32 %v1237, %v1173
      %v1239 = vadd.f32 %v1238, %v1174
      %v1240 = vadd.f32 %v1239, %v1175
      %v1241 = vadd.f32 %v1240, %v1176
      %v1242 = vadd.f32 %v1241, %v1177
      %v1243 = vadd.f32 %v1242, %v1178
      %v1244 = vadd.f32 %v1243, %v1179
      %v1245 = vadd.f32 %v1244, %v1180
      %v1246 = vadd.f32 %v1245, %v1181
      %v1247 = vadd.f32 %v1246, %v1182
      %v1248 = vadd.f32 %v1247, %v1183
      %v1249 = vadd.f32 %v1248, %v1184
      %v1250 = vadd.f32 %v1249, %v1185
      %v1251 = vadd.f32 %v1250, %v1186
      %v1252 = vadd.f32 %v1251, %v1187
      %v1253 = vadd.f32 %v1252, %v1188
      %v1254 = vadd.f32 %v1253, %v1189
      %v1255 = vadd.f32 %v1254, %v1190
      %v1256 = vadd.f32 %v1255, %v1191
      %v1257 = vadd.f32 %v1256, %v1192
      %v1258 = vadd.f32 %v1257, %v1193
      %v1259 = vadd.f32 %v1258, %v1194
      %v1260 = vrot.slane %v1259, 4
      %v1261 = vadd.f32 %v1259, %v1260
      %v1262 = vrot.slane %v1261, 2
      %v1263 = vadd.f32 %v1261, %v1262
      %v1264 = vrot.slane %v1263, 1
      %v1265 = vadd.f32 %v1263, %v1264
      %v1266 = vmul.f32 %v1265, 0.001953125
      %v1267 = vmul.f32 %v1131, %v1131
      %v1268 = vmul.f32 %v1132, %v1132
      %v1269 = vmul.f32 %v1133, %v1133
      %v1270 = vmul.f32 %v1134, %v1134
      %v1271 = vmul.f32 %v1135, %v1135
      %v1272 = vmul.f32 %v1136, %v1136
      %v1273 = vmul.f32 %v1137, %v1137
      %v1274 = vmul.f32 %v1138, %v1138
      %v1275 = vmul.f32 %v1139, %v1139
      %v1276 = vmul.f32 %v1140, %v1140
      %v1277 = vmul.f32 %v1141, %v1141
      %v1278 = vmul.f32 %v1142, %v1142
      %v1279 = vmul.f32 %v1143, %v1143
      %v1280 = vmul.f32 %v1144, %v1144
      %v1281 = vmul.f32 %v1145, %v1145
      %v1282 = vmul.f32 %v1146, %v1146
      %v1283 = vmul.f32 %v1147, %v1147
      %v1284 = vmul.f32 %v1148, %v1148
      %v1285 = vmul.f32 %v1149, %v1149
      %v1286 = vmul.f32 %v1150, %v1150
      %v1287 = vmul.f32 %v1151, %v1151
      %v1288 = vmul.f32 %v1152, %v1152
      %v1289 = vmul.f32 %v1153, %v1153
      %v1290 = vmul.f32 %v1154, %v1154
      %v1291 = vmul.f32 %v1155, %v1155
      %v1292 = vmul.f32 %v1156, %v1156
      %v1293 = vmul.f32 %v1157, %v1157
      %v1294 = vmul.f32 %v1158, %v1158
      %v1295 = vmul.f32 %v1159, %v1159
      %v1296 = vmul.f32 %v1160, %v1160
      %v1297 = vmul.f32 %v1161, %v1161
      %v1298 = vmul.f32 %v1162, %v1162
      %v1299 = vmul.f32 %v1163, %v1163
      %v1300 = vmul.f32 %v1164, %v1164
      %v1301 = vmul.f32 %v1165, %v1165
      %v1302 = vmul.f32 %v1166, %v1166
      %v1303 = vmul.f32 %v1167, %v1167
      %v1304 = vmul.f32 %v1168, %v1168
      %v1305 = vmul.f32 %v1169, %v1169
      %v1306 = vmul.f32 %v1170, %v1170
      %v1307 = vmul.f32 %v1171, %v1171
      %v1308 = vmul.f32 %v1172, %v1172
      %v1309 = vmul.f32 %v1173, %v1173
      %v1310 = vmul.f32 %v1174, %v1174
      %v1311 = vmul.f32 %v1175, %v1175
      %v1312 = vmul.f32 %v1176, %v1176
      %v1313 = vmul.f32 %v1177, %v1177
      %v1314 = vmul.f32 %v1178, %v1178
      %v1315 = vmul.f32 %v1179, %v1179
      %v1316 = vmul.f32 %v1180, %v1180
      %v1317 = vmul.f32 %v1181, %v1181
      %v1318 = vmul.f32 %v1182, %v1182
      %v1319 = vmul.f32 %v1183, %v1183
      %v1320 = vmul.f32 %v1184, %v1184
      %v1321 = vmul.f32 %v1185, %v1185
      %v1322 = vmul.f32 %v1186, %v1186
      %v1323 = vmul.f32 %v1187, %v1187
      %v1324 = vmul.f32 %v1188, %v1188
      %v1325 = vmul.f32 %v1189, %v1189
      %v1326 = vmul.f32 %v1190, %v1190
      %v1327 = vmul.f32 %v1191, %v1191
      %v1328 = vmul.f32 %v1192, %v1192
      %v1329 = vmul.f32 %v1193, %v1193
      %v1330 = vmul.f32 %v1194, %v1194
      %v1331 = vadd.f32 %v1267, %v1268
      %v1332 = vadd.f32 %v1331, %v1269
      %v1333 = vadd.f32 %v1332, %v1270
      %v1334 = vadd.f32 %v1333, %v1271
      %v1335 = vadd.f32 %v1334, %v1272
      %v1336 = vadd.f32 %v1335, %v1273
      %v1337 = vadd.f32 %v1336, %v1274
      %v1338 = vadd.f32 %v1337, %v1275
      %v1339 = vadd.f32 %v1338, %v1276
      %v1340 = vadd.f32 %v1339, %v1277
      %v1341 = vadd.f32 %v1340, %v1278
      %v1342 = vadd.f32 %v1341, %v1279
      %v1343 = vadd.f32 %v1342, %v1280
      %v1344 = vadd.f32 %v1343, %v1281
      %v1345 = vadd.f32 %v1344, %v1282
      %v1346 = vadd.f32 %v1345, %v1283
      %v1347 = vadd.f32 %v1346, %v1284
      %v1348 = vadd.f32 %v1347, %v1285
      %v1349 = vadd.f32 %v1348, %v1286
      %v1350 = vadd.f32 %v1349, %v1287
      %v1351 = vadd.f32 %v1350, %v1288
      %v1352 = vadd.f32 %v1351, %v1289
      %v1353 = vadd.f32 %v1352, %v1290
      %v1354 = vadd.f32 %v1353, %v1291
      %v1355 = vadd.f32 %v1354, %v1292
      %v1356 = vadd.f32 %v1355, %v1293
      %v1357 = vadd.f32 %v1356, %v1294
      %v1358 = vadd.f32 %v1357, %v1295
      %v1359 = vadd.f32 %v1358, %v1296
      %v1360 = vadd.f32 %v1359, %v1297
      %v1361 = vadd.f32 %v1360, %v1298
      %v1362 = vadd.f32 %v1361, %v1299
      %v1363 = vadd.f32 %v1362, %v1300
      %v1364 = vadd.f32 %v1363, %v1301
      %v1365 = vadd.f32 %v1364, %v1302
      %v1366 = vadd.f32 %v1365, %v1303
      %v1367 = vadd.f32 %v1366, %v1304
      %v1368 = vadd.f32 %v1367, %v1305
      %v1369 = vadd.f32 %v1368, %v1306
      %v1370 = vadd.f32 %v1369, %v1307
      %v1371 = vadd.f32 %v1370, %v1308
      %v1372 = vadd.f32 %v1371, %v1309
      %v1373 = vadd.f32 %v1372, %v1310
      %v1374 = vadd.f32 %v1373, %v1311
      %v1375 = vadd.f32 %v1374, %v1312
      %v1376 = vadd.f32 %v1375, %v1313
      %v1377 = vadd.f32 %v1376, %v1314
      %v1378 = vadd.f32 %v1377, %v1315
      %v1379 = vadd.f32 %v1378, %v1316
      %v1380 = vadd.f32 %v1379, %v1317
      %v1381 = vadd.f32 %v1380, %v1318
      %v1382 = vadd.f32 %v1381, %v1319
      %v1383 = vadd.f32 %v1382, %v1320
      %v1384 = vadd.f32 %v1383, %v1321
      %v1385 = vadd.f32 %v1384, %v1322
      %v1386 = vadd.f32 %v1385, %v1323
      %v1387 = vadd.f32 %v1386, %v1324
      %v1388 = vadd.f32 %v1387, %v1325
      %v1389 = vadd.f32 %v1388, %v1326
      %v1390 = vadd.f32 %v1389, %v1327
      %v1391 = vadd.f32 %v1390, %v1328
      %v1392 = vadd.f32 %v1391, %v1329
      %v1393 = vadd.f32 %v1392, %v1330
      %v1394 = vrot.slane %v1393, 4
      %v1395 = vadd.f32 %v1393, %v1394
      %v1396 = vrot.slane %v1395, 2
      %v1397 = vadd.f32 %v1395, %v1396
      %v1398 = vrot.slane %v1397, 1
      %v1399 = vadd.f32 %v1397, %v1398
      %v1400 = vmul.f32 %v1399, 0.001953125
      %v1401 = vmul.f32 %v1266, %v1266
      %v1402 = vsub.f32 %v1400, %v1401
      %v1403 = vmax.f32 %v1402, 0.0
      %v1404 = vadd.f32 %v1403, 1e-05
      %v1405 = vrsqrt.pop %v1404
      %v1406 = vmul.f32 %v1405, %v1404
      %v1407 = vmul.f32 %v1406, %v1405
      %v1408 = vmul.f32 0.5, %v1407
      %v1409 = vsub.f32 1.5, %v1408
      %v1410 = vmul.f32 %v1405, %v1409
      %vm1411 = vweird.f32 %v1404
      %vm1412 = vweird.f32 %v1405
      %vm1413 = vmor %vm1411, %vm1412
      %v1414 = vsel %vm1413, %v1405, %v1410
      %v1415 = vmul.f32 %v1195, %v1414
      %v1416 = vmul.f32 %v1266, %v1415
      %v1417 = vsub.f32 %v1196, %v1416
      %v1419 = vperm.slane %v1415, 0
      %v1421 = vmul.f32 %v1131, %v1419
      %v1422 = vmul.f32 %v1132, %v1419
      %v1423 = vmul.f32 %v1133, %v1419
      %v1424 = vmul.f32 %v1134, %v1419
      %v1425 = vmul.f32 %v1135, %v1419
      %v1426 = vmul.f32 %v1136, %v1419
      %v1427 = vmul.f32 %v1137, %v1419
      %v1428 = vmul.f32 %v1138, %v1419
      %v1429 = vmul.f32 %v1139, %v1419
      %v1430 = vmul.f32 %v1140, %v1419
      %v1431 = vmul.f32 %v1141, %v1419
      %v1432 = vmul.f32 %v1142, %v1419
      %v1433 = vmul.f32 %v1143, %v1419
      %v1434 = vmul.f32 %v1144, %v1419
      %v1435 = vmul.f32 %v1145, %v1419
      %v1436 = vmul.f32 %v1146, %v1419
      %v1437 = vmul.f32 %v1147, %v1419
      %v1438 = vmul.f32 %v1148, %v1419
      %v1439 = vmul.f32 %v1149, %v1419
      %v1440 = vmul.f32 %v1150, %v1419
      %v1441 = vmul.f32 %v1151, %v1419
      %v1442 = vmul.f32 %v1152, %v1419
      %v1443 = vmul.f32 %v1153, %v1419
      %v1444 = vmul.f32 %v1154, %v1419
      %v1445 = vmul.f32 %v1155, %v1419
      %v1446 = vmul.f32 %v1156, %v1419
      %v1447 = vmul.f32 %v1157, %v1419
      %v1448 = vmul.f32 %v1158, %v1419
      %v1449 = vmul.f32 %v1159, %v1419
      %v1450 = vmul.f32 %v1160, %v1419
      %v1451 = vmul.f32 %v1161, %v1419
      %v1452 = vmul.f32 %v1162, %v1419
      %v1453 = vmul.f32 %v1163, %v1419
      %v1454 = vmul.f32 %v1164, %v1419
      %v1455 = vmul.f32 %v1165, %v1419
      %v1456 = vmul.f32 %v1166, %v1419
      %v1457 = vmul.f32 %v1167, %v1419
      %v1458 = vmul.f32 %v1168, %v1419
      %v1459 = vmul.f32 %v1169, %v1419
      %v1460 = vmul.f32 %v1170, %v1419
      %v1461 = vmul.f32 %v1171, %v1419
      %v1462 = vmul.f32 %v1172, %v1419
      %v1463 = vmul.f32 %v1173, %v1419
      %v1464 = vmul.f32 %v1174, %v1419
      %v1465 = vmul.f32 %v1175, %v1419
      %v1466 = vmul.f32 %v1176, %v1419
      %v1467 = vmul.f32 %v1177, %v1419
      %v1468 = vmul.f32 %v1178, %v1419
      %v1469 = vmul.f32 %v1179, %v1419
      %v1470 = vmul.f32 %v1180, %v1419
      %v1471 = vmul.f32 %v1181, %v1419
      %v1472 = vmul.f32 %v1182, %v1419
      %v1473 = vmul.f32 %v1183, %v1419
      %v1474 = vmul.f32 %v1184, %v1419
      %v1475 = vmul.f32 %v1185, %v1419
      %v1476 = vmul.f32 %v1186, %v1419
      %v1477 = vmul.f32 %v1187, %v1419
      %v1478 = vmul.f32 %v1188, %v1419
      %v1479 = vmul.f32 %v1189, %v1419
      %v1480 = vmul.f32 %v1190, %v1419
      %v1481 = vmul.f32 %v1191, %v1419
      %v1482 = vmul.f32 %v1192, %v1419
      %v1483 = vmul.f32 %v1193, %v1419
      %v1484 = vmul.f32 %v1194, %v1419
      %v1486 = vperm.slane %v1417, 0
      %v1488 = vadd.f32 %v1421, %v1486
      %v1489 = vadd.f32 %v1422, %v1486
      %v1490 = vadd.f32 %v1423, %v1486
      %v1491 = vadd.f32 %v1424, %v1486
      %v1492 = vadd.f32 %v1425, %v1486
      %v1493 = vadd.f32 %v1426, %v1486
      %v1494 = vadd.f32 %v1427, %v1486
      %v1495 = vadd.f32 %v1428, %v1486
      %v1496 = vadd.f32 %v1429, %v1486
      %v1497 = vadd.f32 %v1430, %v1486
      %v1498 = vadd.f32 %v1431, %v1486
      %v1499 = vadd.f32 %v1432, %v1486
      %v1500 = vadd.f32 %v1433, %v1486
      %v1501 = vadd.f32 %v1434, %v1486
      %v1502 = vadd.f32 %v1435, %v1486
      %v1503 = vadd.f32 %v1436, %v1486
      %v1504 = vadd.f32 %v1437, %v1486
      %v1505 = vadd.f32 %v1438, %v1486
      %v1506 = vadd.f32 %v1439, %v1486
      %v1507 = vadd.f32 %v1440, %v1486
      %v1508 = vadd.f32 %v1441, %v1486
      %v1509 = vadd.f32 %v1442, %v1486
      %v1510 = vadd.f32 %v1443, %v1486
      %v1511 = vadd.f32 %v1444, %v1486
      %v1512 = vadd.f32 %v1445, %v1486
      %v1513 = vadd.f32 %v1446, %v1486
      %v1514 = vadd.f32 %v1447, %v1486
      %v1515 = vadd.f32 %v1448, %v1486
      %v1516 = vadd.f32 %v1449, %v1486
      %v1517 = vadd.f32 %v1450, %v1486
      %v1518 = vadd.f32 %v1451, %v1486
      %v1519 = vadd.f32 %v1452, %v1486
      %v1520 = vadd.f32 %v1453, %v1486
      %v1521 = vadd.f32 %v1454, %v1486
      %v1522 = vadd.f32 %v1455, %v1486
      %v1523 = vadd.f32 %v1456, %v1486
      %v1524 = vadd.f32 %v1457, %v1486
      %v1525 = vadd.f32 %v1458, %v1486
      %v1526 = vadd.f32 %v1459, %v1486
      %v1527 = vadd.f32 %v1460, %v1486
      %v1528 = vadd.f32 %v1461, %v1486
      %v1529 = vadd.f32 %v1462, %v1486
      %v1530 = vadd.f32 %v1463, %v1486
      %v1531 = vadd.f32 %v1464, %v1486
      %v1532 = vadd.f32 %v1465, %v1486
      %v1533 = vadd.f32 %v1466, %v1486
      %v1534 = vadd.f32 %v1467, %v1486
      %v1535 = vadd.f32 %v1468, %v1486
      %v1536 = vadd.f32 %v1469, %v1486
      %v1537 = vadd.f32 %v1470, %v1486
      %v1538 = vadd.f32 %v1471, %v1486
      %v1539 = vadd.f32 %v1472, %v1486
      %v1540 = vadd.f32 %v1473, %v1486
      %v1541 = vadd.f32 %v1474, %v1486
      %v1542 = vadd.f32 %v1475, %v1486
      %v1543 = vadd.f32 %v1476, %v1486
      %v1544 = vadd.f32 %v1477, %v1486
      %v1545 = vadd.f32 %v1478, %v1486
      %v1546 = vadd.f32 %v1479, %v1486
      %v1547 = vadd.f32 %v1480, %v1486
      %v1548 = vadd.f32 %v1481, %v1486
      %v1549 = vadd.f32 %v1482, %v1486
      %v1550 = vadd.f32 %v1483, %v1486
      %v1551 = vadd.f32 %v1484, %v1486
      %v1552 = vmax.f32 %v1488, 0.0
      %v1553 = vmax.f32 %v1489, 0.0
      %v1554 = vmax.f32 %v1490, 0.0
      %v1555 = vmax.f32 %v1491, 0.0
      %v1556 = vmax.f32 %v1492, 0.0
      %v1557 = vmax.f32 %v1493, 0.0
      %v1558 = vmax.f32 %v1494, 0.0
      %v1559 = vmax.f32 %v1495, 0.0
      %v1560 = vmax.f32 %v1496, 0.0
      %v1561 = vmax.f32 %v1497, 0.0
      %v1562 = vmax.f32 %v1498, 0.0
      %v1563 = vmax.f32 %v1499, 0.0
      %v1564 = vmax.f32 %v1500, 0.0
      %v1565 = vmax.f32 %v1501, 0.0
      %v1566 = vmax.f32 %v1502, 0.0
      %v1567 = vmax.f32 %v1503, 0.0
      %v1568 = vmax.f32 %v1504, 0.0
      %v1569 = vmax.f32 %v1505, 0.0
      %v1570 = vmax.f32 %v1506, 0.0
      %v1571 = vmax.f32 %v1507, 0.0
      %v1572 = vmax.f32 %v1508, 0.0
      %v1573 = vmax.f32 %v1509, 0.0
      %v1574 = vmax.f32 %v1510, 0.0
      %v1575 = vmax.f32 %v1511, 0.0
      %v1576 = vmax.f32 %v1512, 0.0
      %v1577 = vmax.f32 %v1513, 0.0
      %v1578 = vmax.f32 %v1514, 0.0
      %v1579 = vmax.f32 %v1515, 0.0
      %v1580 = vmax.f32 %v1516, 0.0
      %v1581 = vmax.f32 %v1517, 0.0
      %v1582 = vmax.f32 %v1518, 0.0
      %v1583 = vmax.f32 %v1519, 0.0
      %v1584 = vmax.f32 %v1520, 0.0
      %v1585 = vmax.f32 %v1521, 0.0
      %v1586 = vmax.f32 %v1522, 0.0
      %v1587 = vmax.f32 %v1523, 0.0
      %v1588 = vmax.f32 %v1524, 0.0
      %v1589 = vmax.f32 %v1525, 0.0
      %v1590 = vmax.f32 %v1526, 0.0
      %v1591 = vmax.f32 %v1527, 0.0
      %v1592 = vmax.f32 %v1528, 0.0
      %v1593 = vmax.f32 %v1529, 0.0
      %v1594 = vmax.f32 %v1530, 0.0
      %v1595 = vmax.f32 %v1531, 0.0
      %v1596 = vmax.f32 %v1532, 0.0
      %v1597 = vmax.f32 %v1533, 0.0
      %v1598 = vmax.f32 %v1534, 0.0
      %v1599 = vmax.f32 %v1535, 0.0
      %v1600 = vmax.f32 %v1536, 0.0
      %v1601 = vmax.f32 %v1537, 0.0
      %v1602 = vmax.f32 %v1538, 0.0
      %v1603 = vmax.f32 %v1539, 0.0
      %v1604 = vmax.f32 %v1540, 0.0
      %v1605 = vmax.f32 %v1541, 0.0
      %v1606 = vmax.f32 %v1542, 0.0
      %v1607 = vmax.f32 %v1543, 0.0
      %v1608 = vmax.f32 %v1544, 0.0
      %v1609 = vmax.f32 %v1545, 0.0
      %v1610 = vmax.f32 %v1546, 0.0
      %v1611 = vmax.f32 %v1547, 0.0
      %v1612 = vmax.f32 %v1548, 0.0
      %v1613 = vmax.f32 %v1549, 0.0
      %v1614 = vmax.f32 %v1550, 0.0
      %v1615 = vmax.f32 %v1551, 0.0
      %v1616 = vpack.c.bf16 %v1552, %v1552
      %v1617 = vpack.c.bf16 %v1553, %v1553
      %v1618 = vpack.c.bf16 %v1554, %v1554
      %v1619 = vpack.c.bf16 %v1555, %v1555
      %v1620 = vpack.c.bf16 %v1556, %v1556
      %v1621 = vpack.c.bf16 %v1557, %v1557
      %v1622 = vpack.c.bf16 %v1558, %v1558
      %v1623 = vpack.c.bf16 %v1559, %v1559
      %v1624 = vpack.c.bf16 %v1560, %v1560
      %v1625 = vpack.c.bf16 %v1561, %v1561
      %v1626 = vpack.c.bf16 %v1562, %v1562
      %v1627 = vpack.c.bf16 %v1563, %v1563
      %v1628 = vpack.c.bf16 %v1564, %v1564
      %v1629 = vpack.c.bf16 %v1565, %v1565
      %v1630 = vpack.c.bf16 %v1566, %v1566
      %v1631 = vpack.c.bf16 %v1567, %v1567
      %v1632 = vpack.c.bf16 %v1568, %v1568
      %v1633 = vpack.c.bf16 %v1569, %v1569
      %v1634 = vpack.c.bf16 %v1570, %v1570
      %v1635 = vpack.c.bf16 %v1571, %v1571
      %v1636 = vpack.c.bf16 %v1572, %v1572
      %v1637 = vpack.c.bf16 %v1573, %v1573
      %v1638 = vpack.c.bf16 %v1574, %v1574
      %v1639 = vpack.c.bf16 %v1575, %v1575
      %v1640 = vpack.c.bf16 %v1576, %v1576
      %v1641 = vpack.c.bf16 %v1577, %v1577
      %v1642 = vpack.c.bf16 %v1578, %v1578
      %v1643 = vpack.c.bf16 %v1579, %v1579
      %v1644 = vpack.c.bf16 %v1580, %v1580
      %v1645 = vpack.c.bf16 %v1581, %v1581
      %v1646 = vpack.c.bf16 %v1582, %v1582
      %v1647 = vpack.c.bf16 %v1583, %v1583
      %v1648 = vpack.c.bf16 %v1584, %v1584
      %v1649 = vpack.c.bf16 %v1585, %v1585
      %v1650 = vpack.c.bf16 %v1586, %v1586
      %v1651 = vpack.c.bf16 %v1587, %v1587
      %v1652 = vpack.c.bf16 %v1588, %v1588
      %v1653 = vpack.c.bf16 %v1589, %v1589
      %v1654 = vpack.c.bf16 %v1590, %v1590
      %v1655 = vpack.c.bf16 %v1591, %v1591
      %v1656 = vpack.c.bf16 %v1592, %v1592
      %v1657 = vpack.c.bf16 %v1593, %v1593
      %v1658 = vpack.c.bf16 %v1594, %v1594
      %v1659 = vpack.c.bf16 %v1595, %v1595
      %v1660 = vpack.c.bf16 %v1596, %v1596
      %v1661 = vpack.c.bf16 %v1597, %v1597
      %v1662 = vpack.c.bf16 %v1598, %v1598
      %v1663 = vpack.c.bf16 %v1599, %v1599
      %v1664 = vpack.c.bf16 %v1600, %v1600
      %v1665 = vpack.c.bf16 %v1601, %v1601
      %v1666 = vpack.c.bf16 %v1602, %v1602
      %v1667 = vpack.c.bf16 %v1603, %v1603
      %v1668 = vpack.c.bf16 %v1604, %v1604
      %v1669 = vpack.c.bf16 %v1605, %v1605
      %v1670 = vpack.c.bf16 %v1606, %v1606
      %v1671 = vpack.c.bf16 %v1607, %v1607
      %v1672 = vpack.c.bf16 %v1608, %v1608
      %v1673 = vpack.c.bf16 %v1609, %v1609
      %v1674 = vpack.c.bf16 %v1610, %v1610
      %v1675 = vpack.c.bf16 %v1611, %v1611
      %v1676 = vpack.c.bf16 %v1612, %v1612
      %v1677 = vpack.c.bf16 %v1613, %v1613
      %v1678 = vpack.c.bf16 %v1614, %v1614
      %v1679 = vpack.c.bf16 %v1615, %v1615
      %1680 = vst [vmem:[#allocation3] sm:$0xf] %v1616
      %1681 = vst [vmem:[#allocation3 + $0x4] sm:$0xf] %v1617
      %1682 = vst [vmem:[#allocation3 + $0x8] sm:$0xf] %v1618
      %1683 = vst [vmem:[#allocation3 + $0xc] sm:$0xf] %v1619
      %1684 = vst [vmem:[#allocation3 + $0x10] sm:$0xf] %v1620
      %1685 = vst [vmem:[#allocation3 + $0x14] sm:$0xf] %v1621
      %1686 = vst [vmem:[#allocation3 + $0x18] sm:$0xf] %v1622
      %1687 = vst [vmem:[#allocation3 + $0x1c] sm:$0xf] %v1623
      %1688 = vst [vmem:[#allocation3 + $0x20] sm:$0xf] %v1624
      %1689 = vst [vmem:[#allocation3 + $0x24] sm:$0xf] %v1625
      %1690 = vst [vmem:[#allocation3 + $0x28] sm:$0xf] %v1626
      %1691 = vst [vmem:[#allocation3 + $0x2c] sm:$0xf] %v1627
      %1692 = vst [vmem:[#allocation3 + $0x30] sm:$0xf] %v1628
      %1693 = vst [vmem:[#allocation3 + $0x34] sm:$0xf] %v1629
      %1694 = vst [vmem:[#allocation3 + $0x38] sm:$0xf] %v1630
      %1695 = vst [vmem:[#allocation3 + $0x3c] sm:$0xf] %v1631
      %1696 = vst [vmem:[#allocation3 + $0x40] sm:$0xf] %v1632
      %1697 = vst [vmem:[#allocation3 + $0x44] sm:$0xf] %v1633
      %1698 = vst [vmem:[#allocation3 + $0x48] sm:$0xf] %v1634
      %1699 = vst [vmem:[#allocation3 + $0x4c] sm:$0xf] %v1635
      %1700 = vst [vmem:[#allocation3 + $0x50] sm:$0xf] %v1636
      %1701 = vst [vmem:[#allocation3 + $0x54] sm:$0xf] %v1637
      %1702 = vst [vmem:[#allocation3 + $0x58] sm:$0xf] %v1638
      %1703 = vst [vmem:[#allocation3 + $0x5c] sm:$0xf] %v1639
      %1704 = vst [vmem:[#allocation3 + $0x60] sm:$0xf] %v1640
      %1705 = vst [vmem:[#allocation3 + $0x64] sm:$0xf] %v1641
      %1706 = vst [vmem:[#allocation3 + $0x68] sm:$0xf] %v1642
      %1707 = vst [vmem:[#allocation3 + $0x6c] sm:$0xf] %v1643
      %1708 = vst [vmem:[#allocation3 + $0x70] sm:$0xf] %v1644
      %1709 = vst [vmem:[#allocation3 + $0x74] sm:$0xf] %v1645
      %1710 = vst [vmem:[#allocation3 + $0x78] sm:$0xf] %v1646
      %1711 = vst [vmem:[#allocation3 + $0x7c] sm:$0xf] %v1647
      %1712 = vst [vmem:[#allocation3 + $0x80] sm:$0xf] %v1648
      %1713 = vst [vmem:[#allocation3 + $0x84] sm:$0xf] %v1649
      %1714 = vst [vmem:[#allocation3 + $0x88] sm:$0xf] %v1650
      %1715 = vst [vmem:[#allocation3 + $0x8c] sm:$0xf] %v1651
      %1716 = vst [vmem:[#allocation3 + $0x90] sm:$0xf] %v1652
      %1717 = vst [vmem:[#allocation3 + $0x94] sm:$0xf] %v1653
      %1718 = vst [vmem:[#allocation3 + $0x98] sm:$0xf] %v1654
      %1719 = vst [vmem:[#allocation3 + $0x9c] sm:$0xf] %v1655
      %1720 = vst [vmem:[#allocation3 + $0xa0] sm:$0xf] %v1656
      %1721 = vst [vmem:[#allocation3 + $0xa4] sm:$0xf] %v1657
      %1722 = vst [vmem:[#allocation3 + $0xa8] sm:$0xf] %v1658
      %1723 = vst [vmem:[#allocation3 + $0xac] sm:$0xf] %v1659
      %1724 = vst [vmem:[#allocation3 + $0xb0] sm:$0xf] %v1660
      %1725 = vst [vmem:[#allocation3 + $0xb4] sm:$0xf] %v1661
      %1726 = vst [vmem:[#allocation3 + $0xb8] sm:$0xf] %v1662
      %1727 = vst [vmem:[#allocation3 + $0xbc] sm:$0xf] %v1663
      %1728 = vst [vmem:[#allocation3 + $0xc0] sm:$0xf] %v1664
      %1729 = vst [vmem:[#allocation3 + $0xc4] sm:$0xf] %v1665
      %1730 = vst [vmem:[#allocation3 + $0xc8] sm:$0xf] %v1666
      %1731 = vst [vmem:[#allocation3 + $0xcc] sm:$0xf] %v1667
      %1732 = vst [vmem:[#allocation3 + $0xd0] sm:$0xf] %v1668
      %1733 = vst [vmem:[#allocation3 + $0xd4] sm:$0xf] %v1669
      %1734 = vst [vmem:[#allocation3 + $0xd8] sm:$0xf] %v1670
      %1735 = vst [vmem:[#allocation3 + $0xdc] sm:$0xf] %v1671
      %1736 = vst [vmem:[#allocation3 + $0xe0] sm:$0xf] %v1672
      %1737 = vst [vmem:[#allocation3 + $0xe4] sm:$0xf] %v1673
      %1738 = vst [vmem:[#allocation3 + $0xe8] sm:$0xf] %v1674
      %1739 = vst [vmem:[#allocation3 + $0xec] sm:$0xf] %v1675
      %1740 = vst [vmem:[#allocation3 + $0xf0] sm:$0xf] %v1676
      %1741 = vst [vmem:[#allocation3 + $0xf4] sm:$0xf] %v1677
      %1742 = vst [vmem:[#allocation3 + $0xf8] sm:$0xf] %v1678
      %1743 = vst [vmem:[#allocation3 + $0xfc] sm:$0xf] %v1679
    $region25: #{conv_bn_act.1} parent=1 // pred_fallthru
      _
    // Predicated region
    $region26: #{conv_bn_act.1} parent=1 // pred_check
      _
    $region27: #{conv_bn_act.1} parent=1 // pred_check_branch
      %1745 = sbr.rel (0) target = $region29
    $region28: #{conv_bn_act.1} parent=1 // pred_region
      %1747 = vsyncadd [#allocation4], 0
      %s1748 = sshll.u32 [#allocation3], 4
      %s1749 = int_to_ptr.vmem [resolvable:$true] %s1748
      %s1750 = sshll.u32 %s4, 4
      %s1751 = int_to_ptr.hbm [resolvable:$true] %s1750
      %1756 = dma.vmem_to_hbm [thread:$0]  %s1749, 4096, %s1751, [#allocation4], 64, 64, 4
    $region29: #{conv_bn_act.1} parent=1 // pred_fallthru
      _
    // Predicated region
    $region30: #{conv_bn_act.1} parent=1 // pred_check
      _
    $region31: #{conv_bn_act.1} parent=1 // pred_check_branch
      %1758 = sbr.rel (0) target = $region33
    $region32: #{conv_bn_act.1} parent=1 // pred_region
      %1760 = dma.done [#allocation4], 4096
    $region33: #{conv_bn_act.1} parent=1 // pred_fallthru
      _
    %1761 = vsyncpa [#allocation4], 1

</llo_original>
